<compile_context>
chip_gen: v5e
topology: v5e:2x2
jax: 0.10.0
libtpu: 0.0.40
codegen_flags: <defaults>
</compile_context>

<pallas_src>
import jax
import jax.numpy as jnp
import numpy as np
from jax.experimental import pallas as pl
from jax.experimental.pallas import tpu as pltpu


def _lora_kernel(x_ref, scale_ref, shift_ref, wt_ref, at_ref, bt_ref, o_ref,
                 a_cond_ref):
    # x_ref:      (1, tS, Din) bf16        scale_ref/shift_ref: (1, 1, R) f32
    # wt_ref:     (Din, tN)    bf16        at_ref: (Din, R) bf16 (resident)
    # bt_ref:     (nN, R, tN)  bf16        (resident, lora_scale folded in)
    # o_ref:      (1, tS, tN)  x.dtype     a_cond_ref: (tS, R) f32 scratch
    j = pl.program_id(2)
    x = x_ref[0]                                                    # (tS, Din)

    # LoRA down-projection + per-batch affine: computed once per (b, s) and
    # reused for every output-feature tile j (scratch persists, j is "arbitrary").
    @pl.when(j == 0)
    def _():
        a_out = jnp.dot(x, at_ref[...], preferred_element_type=jnp.float32)  # (tS, R)
        a_cond_ref[...] = scale_ref[0] * a_out + shift_ref[0]                # f32

    # Frozen base projection for this output tile: MXU, f32 accumulate.
    w_out = jnp.dot(x, wt_ref[...], preferred_element_type=jnp.float32)      # (tS, tN)

    # LoRA up-projection against the resident B_T block for this j.
    bt = bt_ref[j]                                                  # (R, tN) bf16
    b_out = jnp.dot(a_cond_ref[...].astype(bt.dtype), bt,
                    preferred_element_type=jnp.float32)             # (tS, tN)

    o_ref[0] = (w_out + b_out).astype(o_ref.dtype)


def _padded_bytes(shape, dtype):
    """VMEM tile footprint including (8, 128) sublane/lane padding."""
    s = list(shape)
    s[-1] = -(-s[-1] // 128) * 128
    if len(s) >= 2:
        s[-2] = -(-s[-2] // 8) * 8
    n = 1
    for d in s:
        n *= int(d)
    return n * jnp.dtype(dtype).itemsize


def _vmem_ceiling_bytes():
    # ~80% of physical VMEM per core: ~51 MiB on v7x (64 MiB/TC), ~102 MiB on
    # v5e/v6e (128 MiB). Conservative fallback is safe on every generation.
    try:
        return int(pltpu.get_tpu_info().vmem_capacity_bytes * 0.8)
    except Exception:
        return 48 << 20


def simple_lora_linear(x, c, W, A, B, emb_gamma, emb_beta, *,
                       lora_scale=1.0, block_s=512, block_n=256,
                       compute_dtype=jnp.bfloat16):
    """x: (Bsz, S, Din); c: (Bsz, Cdim). Weights in PyTorch Linear layout
    (out_features, in_features). Returns (Bsz, S, Dout) in x.dtype.

    Per-generation tuning: v5e -> block_n=128, block_s>=256; v6e -> block_n=256-512,
    block_s=512-1024; v7x -> block_n=256, block_s~512 (keep Bsz*n_s >= 2 so both
    TensorCores get work)."""
    Bsz, S, Din = x.shape
    Dout = W.shape[0]
    R = A.shape[0]

    block_s = min(block_s, S)
    block_n = min(block_n, Dout)
    # Fallback for non-divisible shapes: whole axis in one tile (no masked path).
    if S % block_s:
        block_s = S
    if Dout % block_n:
        block_n = Dout

    out_dt = x.dtype
    cdt = compute_dtype

    def est(bs, bn):
        nn_ = Dout // bn
        return (2 * _padded_bytes((bs, Din), cdt)           # x tile (double buffered)
                + 2 * _padded_bytes((Din, bn), cdt)         # W_T tile (double buffered)
                + _padded_bytes((Din, R), cdt)              # A_T (resident)
                + nn_ * _padded_bytes((R, bn), cdt)         # B_T (resident, all blocks)
                + 4 * _padded_bytes((1, R), jnp.float32)    # scale + shift
                + 2 * _padded_bytes((bs, bn), out_dt)       # output tile
                + _padded_bytes((bs, R), jnp.float32))      # a_cond scratch

    ceiling = _vmem_ceiling_bytes()
    # Shrink tiles (preserving divisibility) until the padded footprint fits.
    while (1.5 * est(block_s, block_n) > ceiling and block_s > 128
           and S % (block_s // 2) == 0):
        block_s //= 2
    while (1.5 * est(block_s, block_n) > ceiling and block_n > 128
           and Dout % (block_n // 2) == 0):
        block_n //= 2

    n_s = S // block_s
    n_n = Dout // block_n
    vmem_limit = int(min(max(1.5 * est(block_s, block_n), 16 << 20), ceiling))

    # Hoisted conditioning projections: tiny (Bsz,Cdim)@(Cdim,R) dots done once
    # in XLA instead of re-executed on every grid step.
    scale = (jnp.dot(c, emb_gamma.T) + 1.0).astype(jnp.float32).reshape(Bsz, 1, R)
    shift = jnp.dot(c, emb_beta.T).astype(jnp.float32).reshape(Bsz, 1, R)

    # Pre-transposed (K, N) weights -> no in-kernel transpose; lora_scale folded
    # into B (lora_scale == 0.0 then yields b_out == 0, matching the early return).
    x_c = x.astype(cdt)
    W_T = jnp.asarray(W.T, cdt)                                   # (Din, Dout)
    A_T = jnp.asarray(A.T, cdt)                                   # (Din, R)
    B_T = jnp.asarray((B * lora_scale).T, cdt)                    # (R, Dout)
    B_T_blk = B_T.reshape(R, n_n, block_n).transpose(1, 0, 2)     # (n_n, R, block_n)

    return pl.pallas_call(
        _lora_kernel,
        out_shape=jax.ShapeDtypeStruct((Bsz, S, Dout), x.dtype),
        grid_spec=pltpu.PrefetchScalarGridSpec(
            num_scalar_prefetch=0,
            grid=(Bsz, n_s, n_n),
            in_specs=[
                pl.BlockSpec((1, block_s, Din), lambda b, s, j: (b, s, 0)),    # x
                pl.BlockSpec((1, 1, R), lambda b, s, j: (b, 0, 0)),            # scale
                pl.BlockSpec((1, 1, R), lambda b, s, j: (b, 0, 0)),            # shift
                pl.BlockSpec((Din, block_n), lambda b, s, j: (0, j)),          # W_T
                pl.BlockSpec((Din, R), lambda b, s, j: (0, 0),
                             pipeline_mode=pl.Buffered(1)),                    # A_T resident
                pl.BlockSpec((n_n, R, block_n), lambda b, s, j: (0, 0, 0),
                             pipeline_mode=pl.Buffered(1)),                    # B_T resident
            ],
            out_specs=pl.BlockSpec((1, block_s, block_n),
                                   lambda b, s, j: (b, s, j)),
            scratch_shapes=[pltpu.VMEM((block_s, R), jnp.float32)],            # a_cond
        ),
        compiler_params=pltpu.CompilerParams(
            # j must be "arbitrary": the a_cond scratch persists across it.
            # b/s stay "parallel" so v7x's two TensorCores still shard the work.
            dimension_semantics=("parallel", "parallel", "arbitrary"),
            vmem_limit_bytes=vmem_limit),
    )(x_c, scale, shift, W_T, A_T, B_T_blk)


def _reference(x, c, W, A, B, emb_gamma, emb_beta, lora_scale, compute_dtype):
    # Mirrors the kernel's dtype path (bf16 MXU operands, f32 accumulation).
    xc = x.astype(compute_dtype)
    Wt = W.T.astype(compute_dtype)
    At = A.T.astype(compute_dtype)
    Bt = (B * lora_scale).T.astype(compute_dtype)
    w_out = jnp.einsum("bsi,io->bso", xc, Wt, preferred_element_type=jnp.float32)
    scale = (c @ emb_gamma.T + 1.0)[:, None, :].astype(jnp.float32)
    shift = (c @ emb_beta.T)[:, None, :].astype(jnp.float32)
    a_out = jnp.einsum("bsi,ir->bsr", xc, At, preferred_element_type=jnp.float32)
    a_cond = (scale * a_out + shift).astype(compute_dtype)
    b_out = jnp.einsum("bsr,ro->bso", a_cond, Bt, preferred_element_type=jnp.float32)
    return (w_out + b_out).astype(x.dtype)


if __name__ == "__main__":
    # Lane-dense demo sizes chosen so n_n > 1 (exercises the a_cond-scratch reuse
    # across j and the dynamic resident-B_T indexing) and n_s * Bsz >= 2.
    in_features, out_features = 256, 512
    c_dim = 16
    rank = 8
    n_transformations = 1
    lora_scale = 1.0

    Bsz, S = 2, 256

    key = jax.random.PRNGKey(0)
    kx, kc, kw, ka, kb, kg, kbe = jax.random.split(key, 7)

    # Parameter init mirroring __init__:
    #   W, emb_gamma, emb_beta: default nn.Linear init ~ U(-1/sqrt(fan_in), 1/sqrt(fan_in))
    #   A: kaiming_normal(a=1) -> std = 1/sqrt(in_features)
    def uniform_linear(k, out_f, in_f):
        bound = 1.0 / np.sqrt(in_f)
        return jax.random.uniform(k, (out_f, in_f), jnp.float32, -bound, bound)

    W = uniform_linear(kw, out_features, in_features)                        # (Dout, Din)
    A = jax.random.normal(ka, (rank, in_features), jnp.float32) / np.sqrt(in_features)
    # NOTE: the module zero-inits B; use a small non-zero B here so the test
    # actually exercises the LoRA up-projection / modulation path.
    B = 0.1 * jax.random.normal(kb, (out_features, rank), jnp.float32)       # (Dout, R)
    emb_gamma = uniform_linear(kg, rank * n_transformations, c_dim)
    emb_beta = uniform_linear(kbe, rank * n_transformations, c_dim)

    x = jax.random.normal(kx, (Bsz, S, in_features), jnp.float32)
    c = jax.random.normal(kc, (Bsz, c_dim), jnp.float32)   # data_provider.get_batch()

    out = simple_lora_linear(x, c, W, A, B, emb_gamma, emb_beta,
                             lora_scale=lora_scale)
    out = jax.block_until_ready(out)

    ref = _reference(x, c, W, A, B, emb_gamma, emb_beta, lora_scale, jnp.bfloat16)
    np.testing.assert_allclose(np.asarray(out), np.asarray(ref), rtol=2e-2, atol=2e-2)

    print("KERNEL_OK")
</pallas_src>

<mosaic_0001>
module attributes {stable_mosaic.version = 11 : i64} {
  func.func @_lora_kernel(%arg0: i32, %arg1: i32, %arg2: i32, %arg3: memref<1x256x256xbf16, #tpu.memory_space<vmem>>, %arg4: memref<1x1x8xf32, #tpu.memory_space<vmem>>, %arg5: memref<1x1x8xf32, #tpu.memory_space<vmem>>, %arg6: memref<256x256xbf16, #tpu.memory_space<vmem>>, %arg7: memref<256x8xbf16, #tpu.memory_space<vmem>>, %arg8: memref<2x8x256xbf16, #tpu.memory_space<vmem>>, %arg9: memref<1x256x256xf32, #tpu.memory_space<vmem>>, %arg10: memref<256x8xf32, #tpu.memory_space<vmem>>) attributes {dimension_semantics = [#tpu.dimension_semantics<parallel>, #tpu.dimension_semantics<parallel>, #tpu.dimension_semantics<arbitrary>], iteration_bounds = array<i64: 2, 1, 2>, scalar_prefetch = 0 : i64, scratch_operands = 1 : i64, tpu.core_type = #tpu.core_type<tc>, window_params = [{transform_indices = @transform_0, window_bounds = array<i64: 1, 256, 256>}, {transform_indices = @transform_1, window_bounds = array<i64: 1, 1, 8>}, {transform_indices = @transform_2, window_bounds = array<i64: 1, 1, 8>}, {transform_indices = @transform_3, window_bounds = array<i64: 256, 256>}, {pipeline_mode = #tpu.pipeline_mode<synchronous>, transform_indices = @transform_4, window_bounds = array<i64: 256, 8>}, {pipeline_mode = #tpu.pipeline_mode<synchronous>, transform_indices = @transform_5, window_bounds = array<i64: 2, 8, 256>}, {transform_indices = @transform_6, window_bounds = array<i64: 1, 256, 256>}]} {
    %c0 = arith.constant 0 : index
    %c0_0 = arith.constant 0 : index
    %c0_1 = arith.constant 0 : index
    %0 = vector.load %arg3[%c0, %c0_0, %c0_1] : memref<1x256x256xbf16, #tpu.memory_space<vmem>>, vector<1x256x256xbf16>
    %1 = vector.shape_cast %0 : vector<1x256x256xbf16> to vector<256x256xbf16>
    %c0_i32 = arith.constant 0 : i32
    %2 = arith.cmpi eq, %arg2, %c0_i32 : i32
    %3 = arith.extui %2 : i1 to i32
    %c0_i32_2 = arith.constant 0 : i32
    %4 = arith.cmpi ne, %3, %c0_i32_2 : i32
    scf.if %4 {
      %c0_13 = arith.constant 0 : index
      %c0_14 = arith.constant 0 : index
      %17 = vector.load %arg7[%c0_13, %c0_14] : memref<256x8xbf16, #tpu.memory_space<vmem>>, vector<256x8xbf16>
      %cst_15 = arith.constant dense<0.000000e+00> : vector<256x8xf32>
      %18 = tpu.matmul %1, %17, %cst_15 {dimension_numbers = #tpu.dot_dimension_numbers<[1], [0], [0], [1], [0, 0, 1, 1], [], []>} : vector<256x256xbf16>, vector<256x8xbf16>, vector<256x8xf32> -> vector<256x8xf32>
      %c0_16 = arith.constant 0 : index
      %c0_17 = arith.constant 0 : index
      %c0_18 = arith.constant 0 : index
      %19 = vector.load %arg4[%c0_16, %c0_17, %c0_18] : memref<1x1x8xf32, #tpu.memory_space<vmem>>, vector<1x1x8xf32>
      %20 = vector.shape_cast %19 : vector<1x1x8xf32> to vector<1x8xf32>
      %21 = vector.broadcast %20 : vector<1x8xf32> to vector<256x8xf32>
      %22 = arith.mulf %21, %18 : vector<256x8xf32>
      %c0_19 = arith.constant 0 : index
      %c0_20 = arith.constant 0 : index
      %c0_21 = arith.constant 0 : index
      %23 = vector.load %arg5[%c0_19, %c0_20, %c0_21] : memref<1x1x8xf32, #tpu.memory_space<vmem>>, vector<1x1x8xf32>
      %24 = vector.shape_cast %23 : vector<1x1x8xf32> to vector<1x8xf32>
      %25 = vector.broadcast %24 : vector<1x8xf32> to vector<256x8xf32>
      %26 = arith.addf %22, %25 : vector<256x8xf32>
      %c0_22 = arith.constant 0 : index
      %c0_23 = arith.constant 0 : index
      %27 = vector.load %arg10[%c0_22, %c0_23] : memref<256x8xf32, #tpu.memory_space<vmem>>, vector<256x8xf32>
      tpu.vector_store %arg10[%c0_22, %c0_23], %26 {strides = array<i32>} : memref<256x8xf32, #tpu.memory_space<vmem>>, vector<256x8xf32>,
    } else {
    }
    %c0_3 = arith.constant 0 : index
    %c0_4 = arith.constant 0 : index
    %5 = vector.load %arg6[%c0_3, %c0_4] : memref<256x256xbf16, #tpu.memory_space<vmem>>, vector<256x256xbf16>
    %cst = arith.constant dense<0.000000e+00> : vector<256x256xf32>
    %6 = tpu.matmul %1, %5, %cst {dimension_numbers = #tpu.dot_dimension_numbers<[1], [0], [0], [1], [0, 0, 1, 1], [], []>} : vector<256x256xbf16>, vector<256x256xbf16>, vector<256x256xf32> -> vector<256x256xf32>
    %7 = arith.index_cast %arg2 : i32 to index
    %c0_5 = arith.constant 0 : index
    %c0_6 = arith.constant 0 : index
    %8 = vector.load %arg8[%7, %c0_5, %c0_6] : memref<2x8x256xbf16, #tpu.memory_space<vmem>>, vector<1x8x256xbf16>
    %9 = vector.shape_cast %8 : vector<1x8x256xbf16> to vector<8x256xbf16>
    %c0_7 = arith.constant 0 : index
    %c0_8 = arith.constant 0 : index
    %10 = vector.load %arg10[%c0_7, %c0_8] : memref<256x8xf32, #tpu.memory_space<vmem>>, vector<256x8xf32>
    %11 = arith.truncf %10 : vector<256x8xf32> to vector<256x8xbf16>
    %cst_9 = arith.constant dense<0.000000e+00> : vector<256x256xf32>
    %12 = tpu.matmul %11, %9, %cst_9 {dimension_numbers = #tpu.dot_dimension_numbers<[1], [0], [0], [1], [0, 0, 1, 1], [], []>} : vector<256x8xbf16>, vector<8x256xbf16>, vector<256x256xf32> -> vector<256x256xf32>
    %13 = arith.addf %6, %12 : vector<256x256xf32>
    %c0_10 = arith.constant 0 : index
    %c0_11 = arith.constant 0 : index
    %c0_12 = arith.constant 0 : index
    %14 = vector.load %arg9[%c0_10, %c0_11, %c0_12] : memref<1x256x256xf32, #tpu.memory_space<vmem>>, vector<1x256x256xf32>
    %15 = vector.shape_cast %14 : vector<1x256x256xf32> to vector<256x256xf32>
    %16 = vector.shape_cast %13 : vector<256x256xf32> to vector<1x256x256xf32>
    tpu.vector_store %arg9[%c0_10, %c0_11, %c0_12], %16 {strides = array<i32>} : memref<1x256x256xf32, #tpu.memory_space<vmem>>, vector<1x256x256xf32>,
    return
  }
  func.func @transform_0(%arg0: i32, %arg1: i32, %arg2: i32) -> (i32, i32, i32) {
    %c0_i32 = arith.constant 0 : i32
    %c0_i32_0 = arith.constant 0 : i32
    return %arg0, %arg1, %c0_i32 : i32, i32, i32
  }
  func.func @transform_1(%arg0: i32, %arg1: i32, %arg2: i32) -> (i32, i32, i32) {
    %c0_i32 = arith.constant 0 : i32
    %c0_i32_0 = arith.constant 0 : i32
    %c0_i32_1 = arith.constant 0 : i32
    return %arg0, %c0_i32, %c0_i32_0 : i32, i32, i32
  }
  func.func @transform_2(%arg0: i32, %arg1: i32, %arg2: i32) -> (i32, i32, i32) {
    %c0_i32 = arith.constant 0 : i32
    %c0_i32_0 = arith.constant 0 : i32
    %c0_i32_1 = arith.constant 0 : i32
    return %arg0, %c0_i32, %c0_i32_0 : i32, i32, i32
  }
  func.func @transform_3(%arg0: i32, %arg1: i32, %arg2: i32) -> (i32, i32) {
    %c0_i32 = arith.constant 0 : i32
    %c0_i32_0 = arith.constant 0 : i32
    return %c0_i32, %arg2 : i32, i32
  }
  func.func @transform_4(%arg0: i32, %arg1: i32, %arg2: i32) -> (i32, i32) {
    %c0_i32 = arith.constant 0 : i32
    %c0_i32_0 = arith.constant 0 : i32
    %c0_i32_1 = arith.constant 0 : i32
    return %c0_i32, %c0_i32_0 : i32, i32
  }
  func.func @transform_5(%arg0: i32, %arg1: i32, %arg2: i32) -> (i32, i32, i32) {
    %c0_i32 = arith.constant 0 : i32
    %c0_i32_0 = arith.constant 0 : i32
    %c0_i32_1 = arith.constant 0 : i32
    %c0_i32_2 = arith.constant 0 : i32
    return %c0_i32, %c0_i32_0, %c0_i32_1 : i32, i32, i32
  }
  func.func @transform_6(%arg0: i32, %arg1: i32, %arg2: i32) -> (i32, i32, i32) {
    %c0_i32 = arith.constant 0 : i32
    return %arg0, %arg1, %arg2 : i32, i32, i32
  }
}

</mosaic_0001>

<llo_original>
// kernel: tpu_custom_call.1
$region0: #{tpu_custom_call.1}
  #allocation0 [shape = 'u32[]', space=smem, size = 0x4, offset = 0x4, fixed_abs, tag = 'smem constant byte address 0x4 - core index']
  #allocation1 [shape = 'u32[72,128]{1,0:T(1,128)}', space=vmem, size = 0x9000, scoped, tag = 'internal scratch']
  #allocation2 [shape = 'f32[256,8]{1,0:T(8,128)}', space=vmem, size = 0x20000, scoped, tag = 'scratch operand']
  %s0 = inlined_call_operand.hbm [shape: bf16[2,256,256], index: 0, kind: input, shape index: {}]
  %s1 = inlined_call_operand.vmem [shape: f32[2,1,8], index: 1, kind: input, shape index: {}]
  %s2 = inlined_call_operand.vmem [shape: f32[2,1,8], index: 2, kind: input, shape index: {}]
  %s3 = inlined_call_operand.hbm [shape: bf16[256,512], index: 3, kind: input, shape index: {}]
  %s4 = inlined_call_operand.vmem [shape: bf16[256,8], index: 4, kind: input, shape index: {}]
  %s5 = inlined_call_operand.vmem [shape: bf16[2,8,256], index: 5, kind: input, shape index: {}]
  %s6 = inlined_call_operand.hbm [shape: f32[2,256,512], index: 6, kind: output, shape index: {}]
  %s7 = sld [smem:[#allocation0]]
  $region69: #{tpu_custom_call.1} parent=0
    _
  %s9 = ssub.s32 1, %s7
  %s10 = scalar_select 0, %s9, %s7
  $region1: #{tpu_custom_call.1} parent=0
    #allocation3 [shape = 'u8[262144]{0}', space=vmem, size = 0x40000, scoped, tag = 'input window, operand 0']
    #allocation4 [shape = 's32[2]{0}', space=sflag, size = 0x8, scoped, tag = 'scoped memory for tpu_custom_call.1']
    #allocation5 [shape = 's32[2]{0}', space=sflag, size = 0x8, scoped, tag = 'scoped memory for tpu_custom_call.1']
    #allocation6 [shape = 'u8[262144]{0}', space=vmem, size = 0x40000, scoped, tag = 'input window, operand 3']
    #allocation7 [shape = 's32[2]{0}', space=sflag, size = 0x8, scoped, tag = 'scoped memory for tpu_custom_call.1']
    #allocation8 [shape = 'u8[524288]{0}', space=vmem, size = 0x80000, scoped, tag = 'output window, operand 0']
    %11 = vsyncpa [#allocation4], 0
    %s12 = scalar_lea.sflag [#allocation4], 1
    %13 = vsyncpa %s12, 0
    %14 = vsyncpa [#allocation7], 0
    %s15 = scalar_lea.sflag [#allocation7], 1
    %16 = vsyncpa %s15, 0
    %17 = vsyncpa [#allocation5], 0
    %s18 = scalar_lea.sflag [#allocation5], 1
    %19 = vsyncpa %s18, 0
    loop: start=0, step=1, limit=6
    $region2: #{tpu_custom_call.1} parent=1 // loop_pre_header
      _
    $region3: #{tpu_custom_call.1} parent=1 // loop_header
      %s21 = sphi 0, %s25
      %p22 = scmp.ge.s32.totalorder %s21, 6
      %s28 = sphi 0, %s47
      %s29 = sphi 0, %s43
      %s30 = sphi 0, %s39
      %s31 = sphi 0, %s28
      %s32 = sphi 0, %s29
      %s33 = sphi 0, %s30
      %s34 = sphi 0, %s31
      %s35 = sphi 0, %s32
      %s36 = sphi 0, %s33
      %s52 = sphi 0, %s54
      %s55 = sphi 0, %s52
      %s56 = sphi 0, %s55
      %s72 = sphi 0, %s56
      %s78 = sphi 0, %s80
      %s81 = sphi 0, %s78
      %s82 = sphi 0, %s81
      %s98 = sphi 0, %s82
      %s104 = sphi 0, %s106
      %s107 = sphi 0, %s104
      %s108 = sphi 0, %s107
      %s124 = sphi 0, %s108
      %s130 = sphi 0, %s132
      %s133 = sphi 0, %s130
      %s134 = sphi 0, %s133
      %s150 = sphi 0, %s134
      %s154 = sphi 0, %s154
      %s156 = sphi 0, %s154
      %s157 = sphi 0, %s156
      %s171 = sphi 0, %s157
      %s175 = sphi 0, %s175
      %s177 = sphi 0, %s175
      %s178 = sphi 0, %s177
      %s192 = sphi 0, %s178
      %s202 = sphi 0, %s204
      %s205 = sphi 0, %s202
      %s206 = sphi 0, %s205
      %s222 = sphi 0, %s206
    $region4: #{tpu_custom_call.1} parent=1 // loop_header_branch
      %24 = sbr.rel (%p22) target = $region8
    $region5: #{tpu_custom_call.1} parent=1 // loop_body
      %s26 = ssub.s32 %s21, 1
      %s27 = ssub.s32 %s21, 2
      %s37 = sadd.s32 1, %s30
      %p38 = scmp.ge.s32.totalorder %s37, 2
      %s39 = scalar_select %p38, 0, %s37
      %s40 = sadd.s32 1, %s29
      %s41 = scalar_select %p38, %s40, %s29
      %p42 = scmp.ge.s32.totalorder %s41, 1
      %s43 = scalar_select %p42, 0, %s41
      %s44 = sadd.s32 1, %s28
      %s45 = scalar_select %p42, %s44, %s28
      %p46 = scmp.ge.s32.totalorder %s45, 2
      %s47 = scalar_select %p46, 0, %s45
      %s48 = ssub.s32 %s28, %s47
      %s49 = ssub.s32 %s29, %s43
      %s50 = sor.u32 %s48, %s49
      %p51 = scmp.eq.s32.totalorder %s50, 0
      %s53 = sadd.s32 %s52, 1
      %s54 = scalar_select %p51, %s52, %s53
      %p57 = pneg %p51
      %p58 = scmp.eq.s32.totalorder %s21, 3
      %p59 = por %p57, %p58
      %p60 = scmp.ne.s32.totalorder %s52, %s55
      %p61 = scmp.eq.s32.totalorder %s21, 0
      %p62 = por %p60, %p61
      %p63 = scmp.ne.s32.totalorder %s52, %s55
      %p64 = scmp.eq.s32.totalorder %s26, 3
      %p65 = por %p63, %p64
      %p66 = scmp.ne.s32.totalorder %s55, %s56
      %p67 = scmp.eq.s32.totalorder %s26, 0
      %p68 = por %p66, %p67
      %p69 = scmp.ne.s32.totalorder %s55, %s56
      %p70 = scmp.eq.s32.totalorder %s27, 3
      %p71 = por %p69, %p70
      %p73 = scmp.ne.s32.totalorder %s56, %s72
      %p74 = scmp.eq.s32.totalorder %s27, 0
      %p75 = por %p73, %p74
      %s76 = ssub.s32 %s28, %s47
      %p77 = scmp.eq.s32.totalorder %s76, 0
      %s79 = sadd.s32 %s78, 1
      %s80 = scalar_select %p77, %s78, %s79
      %p83 = pneg %p77
      %p84 = scmp.eq.s32.totalorder %s21, 3
      %p85 = por %p83, %p84
      %p86 = scmp.ne.s32.totalorder %s78, %s81
      %p87 = scmp.eq.s32.totalorder %s21, 0
      %p88 = por %p86, %p87
      %p89 = scmp.ne.s32.totalorder %s78, %s81
      %p90 = scmp.eq.s32.totalorder %s26, 3
      %p91 = por %p89, %p90
      %p92 = scmp.ne.s32.totalorder %s81, %s82
      %p93 = scmp.eq.s32.totalorder %s26, 0
      %p94 = por %p92, %p93
      %p95 = scmp.ne.s32.totalorder %s81, %s82
      %p96 = scmp.eq.s32.totalorder %s27, 3
      %p97 = por %p95, %p96
      %p99 = scmp.ne.s32.totalorder %s82, %s98
      %p100 = scmp.eq.s32.totalorder %s27, 0
      %p101 = por %p99, %p100
      %s102 = ssub.s32 %s28, %s47
      %p103 = scmp.eq.s32.totalorder %s102, 0
      %s105 = sadd.s32 %s104, 1
      %s106 = scalar_select %p103, %s104, %s105
      %p109 = pneg %p103
      %p110 = scmp.eq.s32.totalorder %s21, 3
      %p111 = por %p109, %p110
      %p112 = scmp.ne.s32.totalorder %s104, %s107
      %p113 = scmp.eq.s32.totalorder %s21, 0
      %p114 = por %p112, %p113
      %p115 = scmp.ne.s32.totalorder %s104, %s107
      %p116 = scmp.eq.s32.totalorder %s26, 3
      %p117 = por %p115, %p116
      %p118 = scmp.ne.s32.totalorder %s107, %s108
      %p119 = scmp.eq.s32.totalorder %s26, 0
      %p120 = por %p118, %p119
      %p121 = scmp.ne.s32.totalorder %s107, %s108
      %p122 = scmp.eq.s32.totalorder %s27, 3
      %p123 = por %p121, %p122
      %p125 = scmp.ne.s32.totalorder %s108, %s124
      %p126 = scmp.eq.s32.totalorder %s27, 0
      %p127 = por %p125, %p126
      %s128 = ssub.s32 %s30, %s39
      %p129 = scmp.eq.s32.totalorder %s128, 0
      %s131 = sadd.s32 %s130, 1
      %s132 = scalar_select %p129, %s130, %s131
      %p135 = pneg %p129
      %p136 = scmp.eq.s32.totalorder %s21, 3
      %p137 = por %p135, %p136
      %p138 = scmp.ne.s32.totalorder %s130, %s133
      %p139 = scmp.eq.s32.totalorder %s21, 0
      %p140 = por %p138, %p139
      %p141 = scmp.ne.s32.totalorder %s130, %s133
      %p142 = scmp.eq.s32.totalorder %s26, 3
      %p143 = por %p141, %p142
      %p144 = scmp.ne.s32.totalorder %s133, %s134
      %p145 = scmp.eq.s32.totalorder %s26, 0
      %p146 = por %p144, %p145
      %p147 = scmp.ne.s32.totalorder %s133, %s134
      %p148 = scmp.eq.s32.totalorder %s27, 3
      %p149 = por %p147, %p148
      %p151 = scmp.ne.s32.totalorder %s134, %s150
      %p152 = scmp.eq.s32.totalorder %s27, 0
      %p153 = por %p151, %p152
      %s155 = sadd.s32 %s154, 1
      %p158 = scmp.eq.s32.totalorder %s21, 3
      %p159 = scmp.ne.s32.totalorder %s154, %s156
      %p160 = scmp.eq.s32.totalorder %s21, 0
      %p161 = por %p159, %p160
      %p162 = scmp.ne.s32.totalorder %s154, %s156
      %p163 = scmp.eq.s32.totalorder %s26, 3
      %p164 = por %p162, %p163
      %p165 = scmp.ne.s32.totalorder %s156, %s157
      %p166 = scmp.eq.s32.totalorder %s26, 0
      %p167 = por %p165, %p166
      %p168 = scmp.ne.s32.totalorder %s156, %s157
      %p169 = scmp.eq.s32.totalorder %s27, 3
      %p170 = por %p168, %p169
      %p172 = scmp.ne.s32.totalorder %s157, %s171
      %p173 = scmp.eq.s32.totalorder %s27, 0
      %p174 = por %p172, %p173
      %s176 = sadd.s32 %s175, 1
      %p179 = scmp.eq.s32.totalorder %s21, 3
      %p180 = scmp.ne.s32.totalorder %s175, %s177
      %p181 = scmp.eq.s32.totalorder %s21, 0
      %p182 = por %p180, %p181
      %p183 = scmp.ne.s32.totalorder %s175, %s177
      %p184 = scmp.eq.s32.totalorder %s26, 3
      %p185 = por %p183, %p184
      %p186 = scmp.ne.s32.totalorder %s177, %s178
      %p187 = scmp.eq.s32.totalorder %s26, 0
      %p188 = por %p186, %p187
      %p189 = scmp.ne.s32.totalorder %s177, %s178
      %p190 = scmp.eq.s32.totalorder %s27, 3
      %p191 = por %p189, %p190
      %p193 = scmp.ne.s32.totalorder %s178, %s192
      %p194 = scmp.eq.s32.totalorder %s27, 0
      %p195 = por %p193, %p194
      %s196 = ssub.s32 %s28, %s47
      %s197 = ssub.s32 %s29, %s43
      %s198 = sor.u32 %s196, %s197
      %s199 = ssub.s32 %s30, %s39
      %s200 = sor.u32 %s198, %s199
      %p201 = scmp.eq.s32.totalorder %s200, 0
      %s203 = sadd.s32 %s202, 1
      %s204 = scalar_select %p201, %s202, %s203
      %p207 = pneg %p201
      %p208 = scmp.eq.s32.totalorder %s21, 3
      %p209 = por %p207, %p208
      %p210 = scmp.ne.s32.totalorder %s202, %s205
      %p211 = scmp.eq.s32.totalorder %s21, 0
      %p212 = por %p210, %p211
      %p213 = scmp.ne.s32.totalorder %s202, %s205
      %p214 = scmp.eq.s32.totalorder %s26, 3
      %p215 = por %p213, %p214
      %p216 = scmp.ne.s32.totalorder %s205, %s206
      %p217 = scmp.eq.s32.totalorder %s26, 0
      %p218 = por %p216, %p217
      %p219 = scmp.ne.s32.totalorder %s205, %s206
      %p220 = scmp.eq.s32.totalorder %s27, 3
      %p221 = por %p219, %p220
      %p223 = scmp.ne.s32.totalorder %s206, %s222
      %p224 = scmp.eq.s32.totalorder %s27, 0
      %p225 = por %p223, %p224
      %p226 = scmp.le.s32.totalorder 1, %s21
      %p227 = scmp.lt.s32.totalorder %s21, 5
      %p228 = pnand %p226, %p227
      %p229 = pneg %p228
      // Predicated region
      $region9: #{tpu_custom_call.1} parent=5 // pred_check
        _
      $region10: #{tpu_custom_call.1} parent=5 // pred_check_branch
        %231 = sbr.rel (%p228) target = $region12
      $region11: #{tpu_custom_call.1} parent=5 // pred_region
        %s232 = ssub.s32 %s21, 1
        // Predicated region
        $region13: #{tpu_custom_call.1} parent=11 // pred_check
          %p233 = pneg %p167
        $region14: #{tpu_custom_call.1} parent=11 // pred_check_branch
          %235 = sbr.rel (%p233) target = $region16
        $region15: #{tpu_custom_call.1} parent=11 // pred_region
          _
        $region16: #{tpu_custom_call.1} parent=11 // pred_fallthru
          _
        // Predicated region
        $region17: #{tpu_custom_call.1} parent=11 // pred_check
          %p236 = pneg %p188
        $region18: #{tpu_custom_call.1} parent=11 // pred_check_branch
          %238 = sbr.rel (%p236) target = $region20
        $region19: #{tpu_custom_call.1} parent=11 // pred_region
          _
        $region20: #{tpu_custom_call.1} parent=11 // pred_fallthru
          _
      $region12: #{tpu_custom_call.1} parent=5 // pred_fallthru
        _
      %p239 = scmp.lt.s32.totalorder %s21, 4
      // Predicated region
      $region21: #{tpu_custom_call.1} parent=5 // pred_check
        %p240 = pneg %p239
      $region22: #{tpu_custom_call.1} parent=5 // pred_check_branch
        %242 = sbr.rel (%p240) target = $region24
      $region23: #{tpu_custom_call.1} parent=5 // pred_region
        // Predicated region
        $region25: #{tpu_custom_call.1} parent=23 // pred_check
          %p243 = pneg %p62
        $region26: #{tpu_custom_call.1} parent=23 // pred_check_branch
          %245 = sbr.rel (%p243) target = $region28
        $region27: #{tpu_custom_call.1} parent=23 // pred_region
          %s246 = sand.u32 %s52, 1
          %s247 = scalar_lea.sflag [#allocation4], %s246
          %s248 = sand.u32 %s52, 1
          %s249 = smul.addr %s248, 256
          %s250 = scalar_lea.vmem [#allocation3], %s249
          %s251 = smul.u32 32, %s29
          %253 = vsyncadd %s247, 0
          %s254 = smul.addr %s251, 2
          %s255 = smul.addr %s28, 64
          %s256 = sadd.s32 %s254, %s255
          %s257 = smul.addr %s256, 4
          %s258 = scalar_lea.hbm %s0, %s257
          %s259 = sshll.u32 %s258, 4
          %s260 = int_to_ptr.hbm [resolvable:$true] %s259
          %s261 = sshll.u32 %s250, 4
          %s262 = int_to_ptr.vmem [resolvable:$true] %s261
          %267 = dma.hbm_to_vmem [thread:$0]  %s260, 4096, %s262, %s247, 128, 128, 8
        $region28: #{tpu_custom_call.1} parent=23 // pred_fallthru
          _
        // Predicated region
        $region29: #{tpu_custom_call.1} parent=23 // pred_check
          %p268 = pneg %p88
        $region30: #{tpu_custom_call.1} parent=23 // pred_check_branch
          %270 = sbr.rel (%p268) target = $region32
        $region31: #{tpu_custom_call.1} parent=23 // pred_region
          %p271 = scmp.lt.s32.totalorder %s28, 1
          %s272 = scalar_select %p271, %s28, 1
          %s273 = scalar_lea.vmem %s1, %s272
        $region32: #{tpu_custom_call.1} parent=23 // pred_fallthru
          _
        // Predicated region
        $region33: #{tpu_custom_call.1} parent=23 // pred_check
          %p274 = pneg %p114
        $region34: #{tpu_custom_call.1} parent=23 // pred_check_branch
          %276 = sbr.rel (%p274) target = $region36
        $region35: #{tpu_custom_call.1} parent=23 // pred_region
          %p277 = scmp.lt.s32.totalorder %s28, 1
          %s278 = scalar_select %p277, %s28, 1
          %s279 = scalar_lea.vmem %s2, %s278
        $region36: #{tpu_custom_call.1} parent=23 // pred_fallthru
          _
        // Predicated region
        $region37: #{tpu_custom_call.1} parent=23 // pred_check
          %p280 = pneg %p140
        $region38: #{tpu_custom_call.1} parent=23 // pred_check_branch
          %282 = sbr.rel (%p280) target = $region40
        $region39: #{tpu_custom_call.1} parent=23 // pred_region
          %s283 = sand.u32 %s130, 1
          %s284 = scalar_lea.sflag [#allocation7], %s283
          %s285 = sand.u32 %s130, 1
          %s286 = smul.addr %s285, 256
          %s287 = scalar_lea.vmem [#allocation6], %s286
          %s288 = smul.u32 2, %s30
          %290 = vsyncadd %s284, 0
          %s291 = smul.addr %s288, 4
          %s292 = scalar_lea.hbm %s3, %s291
          %s293 = sshll.u32 %s292, 4
          %s294 = int_to_ptr.hbm [resolvable:$true] %s293
          %s295 = sshll.u32 %s287, 4
          %s296 = int_to_ptr.vmem [resolvable:$true] %s295
          %301 = dma.hbm_to_vmem [thread:$0]  %s294, 4096, %s296, %s284, 256, 128, 8
        $region40: #{tpu_custom_call.1} parent=23 // pred_fallthru
          _
      $region24: #{tpu_custom_call.1} parent=5 // pred_fallthru
        _
      %p302 = scmp.le.s32.totalorder 1, %s21
      %p303 = scmp.lt.s32.totalorder %s21, 5
      %p304 = pnand %p302, %p303
      %p305 = pneg %p304
      // Predicated region
      $region41: #{tpu_custom_call.1} parent=5 // pred_check
        _
      $region42: #{tpu_custom_call.1} parent=5 // pred_check_branch
        %307 = sbr.rel (%p304) target = $region44
      $region43: #{tpu_custom_call.1} parent=5 // pred_region
        %s308 = ssub.s32 %s21, 1
        %s309 = sand.u32 %s55, 1
        %s310 = scalar_lea.sflag [#allocation4], %s309
        %s311 = sand.u32 %s55, 1
        %s312 = smul.addr %s311, 256
        %s313 = scalar_lea.vmem [#allocation3], %s312
        // Predicated region
        $region45: #{tpu_custom_call.1} parent=43 // pred_check
          %p314 = pneg %p68
        $region46: #{tpu_custom_call.1} parent=43 // pred_check_branch
          %316 = sbr.rel (%p314) target = $region48
        $region47: #{tpu_custom_call.1} parent=43 // pred_region
          %318 = dma.done %s310, 4096
        $region48: #{tpu_custom_call.1} parent=43 // pred_fallthru
          _
        %s319 = sand.u32 %s133, 1
        %s320 = scalar_lea.sflag [#allocation7], %s319
        %s321 = sand.u32 %s133, 1
        %s322 = smul.addr %s321, 256
        %s323 = scalar_lea.vmem [#allocation6], %s322
        // Predicated region
        $region49: #{tpu_custom_call.1} parent=43 // pred_check
          %p324 = pneg %p146
        $region50: #{tpu_custom_call.1} parent=43 // pred_check_branch
          %326 = sbr.rel (%p324) target = $region52
        $region51: #{tpu_custom_call.1} parent=43 // pred_region
          %328 = dma.done %s320, 4096
        $region52: #{tpu_custom_call.1} parent=43 // pred_fallthru
          _
        %s329 = sand.u32 %s55, 1
        %s330 = scalar_lea.sflag [#allocation4], %s329
        %s331 = sand.u32 %s55, 1
        %s332 = smul.addr %s331, 256
        %s333 = scalar_lea.vmem [#allocation3], %s332
        %p334 = pneg %p68
        %p335 = pneg %p65
        %p336 = scmp.lt.s32.totalorder %s31, 1
        %s337 = scalar_select %p336, %s31, 1
        %s338 = scalar_lea.vmem %s1, %s337
        %p339 = pneg %p94
        %p340 = pneg %p91
        %p341 = scmp.lt.s32.totalorder %s31, 1
        %s342 = scalar_select %p341, %s31, 1
        %s343 = scalar_lea.vmem %s2, %s342
        %p344 = pneg %p120
        %p345 = pneg %p117
        %s346 = sand.u32 %s133, 1
        %s347 = scalar_lea.sflag [#allocation7], %s346
        %s348 = sand.u32 %s133, 1
        %s349 = smul.addr %s348, 256
        %s350 = scalar_lea.vmem [#allocation6], %s349
        %p351 = pneg %p146
        %p352 = pneg %p143
        %p353 = pneg %p167
        %p354 = pneg %p164
        %p355 = pneg %p188
        %p356 = pneg %p185
        %p357 = pneg %p218
        %p358 = pneg %p215
        %s359 = sand.u32 %s205, 1
        %s360 = scalar_lea.sflag [#allocation5], %s359
        %s361 = sand.u32 %s205, 1
        %s362 = smul.addr %s361, 512
        %s363 = scalar_lea.vmem [#allocation8], %s362
        %s364 = smul.u32 32, %s32
        %p365 = scmp.lt.s32.totalorder %s31, 1
        %s366 = scalar_select %p365, %s31, 1
        %s367 = scalar_lea.vmem %s1, %s366
        %p368 = scmp.lt.s32.totalorder %s31, 1
        %s369 = scalar_select %p368, %s31, 1
        %s370 = scalar_lea.vmem %s2, %s369
        %s371 = smul.u32 2, %s33
        %s372 = smul.u32 32, %s32
        %s373 = smul.u32 2, %s33
        %v375 = vld [vmem:[%s313] sm:$0xff]
        %v376 = vld [vmem:[%s313 + $0x8] sm:$0xff]
        %v377 = vld [vmem:[%s313 + $0x10] sm:$0xff]
        %v378 = vld [vmem:[%s313 + $0x18] sm:$0xff]
        %v379 = vld [vmem:[%s313 + $0x20] sm:$0xff]
        %v380 = vld [vmem:[%s313 + $0x28] sm:$0xff]
        %v381 = vld [vmem:[%s313 + $0x30] sm:$0xff]
        %v382 = vld [vmem:[%s313 + $0x38] sm:$0xff]
        %v383 = vld [vmem:[%s313 + $0x40] sm:$0xff]
        %v384 = vld [vmem:[%s313 + $0x48] sm:$0xff]
        %v385 = vld [vmem:[%s313 + $0x50] sm:$0xff]
        %v386 = vld [vmem:[%s313 + $0x58] sm:$0xff]
        %v387 = vld [vmem:[%s313 + $0x60] sm:$0xff]
        %v388 = vld [vmem:[%s313 + $0x68] sm:$0xff]
        %v389 = vld [vmem:[%s313 + $0x70] sm:$0xff]
        %v390 = vld [vmem:[%s313 + $0x78] sm:$0xff]
        %v391 = vld [vmem:[%s313 + $0x80] sm:$0xff]
        %v392 = vld [vmem:[%s313 + $0x88] sm:$0xff]
        %v393 = vld [vmem:[%s313 + $0x90] sm:$0xff]
        %v394 = vld [vmem:[%s313 + $0x98] sm:$0xff]
        %v395 = vld [vmem:[%s313 + $0xa0] sm:$0xff]
        %v396 = vld [vmem:[%s313 + $0xa8] sm:$0xff]
        %v397 = vld [vmem:[%s313 + $0xb0] sm:$0xff]
        %v398 = vld [vmem:[%s313 + $0xb8] sm:$0xff]
        %v399 = vld [vmem:[%s313 + $0xc0] sm:$0xff]
        %v400 = vld [vmem:[%s313 + $0xc8] sm:$0xff]
        %v401 = vld [vmem:[%s313 + $0xd0] sm:$0xff]
        %v402 = vld [vmem:[%s313 + $0xd8] sm:$0xff]
        %v403 = vld [vmem:[%s313 + $0xe0] sm:$0xff]
        %v404 = vld [vmem:[%s313 + $0xe8] sm:$0xff]
        %v405 = vld [vmem:[%s313 + $0xf0] sm:$0xff]
        %v406 = vld [vmem:[%s313 + $0xf8] sm:$0xff]
        %p407 = scmp.eq.s32.totalorder %s33, 0
        // Predicated region
        $region53: #{tpu_custom_call.1} parent=43 // pred_check
          %p408 = pneg %p407
        $region54: #{tpu_custom_call.1} parent=43 // pred_check_branch
          %410 = sbr.rel (%p408) target = $region56
        $region55: #{tpu_custom_call.1} parent=43 // pred_region
          %v411 = vld [vmem:[%s4] sm:$0xf]
          %v412 = vld [vmem:[%s4 + $0x4] sm:$0xf]
          %v413 = vld [vmem:[%s4 + $0x8] sm:$0xf]
          %v414 = vld [vmem:[%s4 + $0xc] sm:$0xf]
          %v415 = vld [vmem:[%s4 + $0x10] sm:$0xf]
          %v416 = vld [vmem:[%s4 + $0x14] sm:$0xf]
          %v417 = vld [vmem:[%s4 + $0x18] sm:$0xf]
          %v418 = vld [vmem:[%s4 + $0x1c] sm:$0xf]
          %v419 = vld [vmem:[%s4 + $0x20] sm:$0xf]
          %v420 = vld [vmem:[%s4 + $0x24] sm:$0xf]
          %v421 = vld [vmem:[%s4 + $0x28] sm:$0xf]
          %v422 = vld [vmem:[%s4 + $0x2c] sm:$0xf]
          %v423 = vld [vmem:[%s4 + $0x30] sm:$0xf]
          %v424 = vld [vmem:[%s4 + $0x34] sm:$0xf]
          %v425 = vld [vmem:[%s4 + $0x38] sm:$0xf]
          %v426 = vld [vmem:[%s4 + $0x3c] sm:$0xf]
          %v427 = vld [vmem:[%s4 + $0x40] sm:$0xf]
          %v428 = vld [vmem:[%s4 + $0x44] sm:$0xf]
          %v429 = vld [vmem:[%s4 + $0x48] sm:$0xf]
          %v430 = vld [vmem:[%s4 + $0x4c] sm:$0xf]
          %v431 = vld [vmem:[%s4 + $0x50] sm:$0xf]
          %v432 = vld [vmem:[%s4 + $0x54] sm:$0xf]
          %v433 = vld [vmem:[%s4 + $0x58] sm:$0xf]
          %v434 = vld [vmem:[%s4 + $0x5c] sm:$0xf]
          %v435 = vld [vmem:[%s4 + $0x60] sm:$0xf]
          %v436 = vld [vmem:[%s4 + $0x64] sm:$0xf]
          %v437 = vld [vmem:[%s4 + $0x68] sm:$0xf]
          %v438 = vld [vmem:[%s4 + $0x6c] sm:$0xf]
          %v439 = vld [vmem:[%s4 + $0x70] sm:$0xf]
          %v440 = vld [vmem:[%s4 + $0x74] sm:$0xf]
          %v441 = vld [vmem:[%s4 + $0x78] sm:$0xf]
          %v442 = vld [vmem:[%s4 + $0x7c] sm:$0xf]
          %v475 = vunpack.c.l.b16 %v375
          %v476 = vunpack.c.h.b16 %v375
          %v477 = vunpack.c.l.b16 %v376
          %v478 = vunpack.c.h.b16 %v376
          %v479 = vunpack.c.l.b16 %v377
          %v480 = vunpack.c.h.b16 %v377
          %v481 = vunpack.c.l.b16 %v378
          %v482 = vunpack.c.h.b16 %v378
          %v483 = vunpack.c.l.b16 %v379
          %v484 = vunpack.c.h.b16 %v379
          %v485 = vunpack.c.l.b16 %v380
          %v486 = vunpack.c.h.b16 %v380
          %v487 = vunpack.c.l.b16 %v381
          %v488 = vunpack.c.h.b16 %v381
          %v489 = vunpack.c.l.b16 %v382
          %v490 = vunpack.c.h.b16 %v382
          %v491 = vunpack.c.l.b16 %v383
          %v492 = vunpack.c.h.b16 %v383
          %v493 = vunpack.c.l.b16 %v384
          %v494 = vunpack.c.h.b16 %v384
          %v495 = vunpack.c.l.b16 %v385
          %v496 = vunpack.c.h.b16 %v385
          %v497 = vunpack.c.l.b16 %v386
          %v498 = vunpack.c.h.b16 %v386
          %v499 = vunpack.c.l.b16 %v387
          %v500 = vunpack.c.h.b16 %v387
          %v501 = vunpack.c.l.b16 %v388
          %v502 = vunpack.c.h.b16 %v388
          %v503 = vunpack.c.l.b16 %v389
          %v504 = vunpack.c.h.b16 %v389
          %v505 = vunpack.c.l.b16 %v390
          %v506 = vunpack.c.h.b16 %v390
          %v507 = vunpack.c.l.b16 %v391
          %v508 = vunpack.c.h.b16 %v391
          %v509 = vunpack.c.l.b16 %v392
          %v510 = vunpack.c.h.b16 %v392
          %v511 = vunpack.c.l.b16 %v393
          %v512 = vunpack.c.h.b16 %v393
          %v513 = vunpack.c.l.b16 %v394
          %v514 = vunpack.c.h.b16 %v394
          %v515 = vunpack.c.l.b16 %v395
          %v516 = vunpack.c.h.b16 %v395
          %v517 = vunpack.c.l.b16 %v396
          %v518 = vunpack.c.h.b16 %v396
          %v519 = vunpack.c.l.b16 %v397
          %v520 = vunpack.c.h.b16 %v397
          %v521 = vunpack.c.l.b16 %v398
          %v522 = vunpack.c.h.b16 %v398
          %v523 = vunpack.c.l.b16 %v399
          %v524 = vunpack.c.h.b16 %v399
          %v525 = vunpack.c.l.b16 %v400
          %v526 = vunpack.c.h.b16 %v400
          %v527 = vunpack.c.l.b16 %v401
          %v528 = vunpack.c.h.b16 %v401
          %v529 = vunpack.c.l.b16 %v402
          %v530 = vunpack.c.h.b16 %v402
          %v531 = vunpack.c.l.b16 %v403
          %v532 = vunpack.c.h.b16 %v403
          %v533 = vunpack.c.l.b16 %v404
          %v534 = vunpack.c.h.b16 %v404
          %v535 = vunpack.c.l.b16 %v405
          %v536 = vunpack.c.h.b16 %v405
          %v537 = vunpack.c.l.b16 %v406
          %v538 = vunpack.c.h.b16 %v406
          %v539 = vpack.c.b16 %v477, %v475
          %v540 = vpack.c.b16 %v478, %v476
          %v541 = vpack.c.b16 %v481, %v479
          %v542 = vpack.c.b16 %v482, %v480
          %v543 = vpack.c.b16 %v485, %v483
          %v544 = vpack.c.b16 %v486, %v484
          %v545 = vpack.c.b16 %v489, %v487
          %v546 = vpack.c.b16 %v490, %v488
          %v547 = vpack.c.b16 %v493, %v491
          %v548 = vpack.c.b16 %v494, %v492
          %v549 = vpack.c.b16 %v497, %v495
          %v550 = vpack.c.b16 %v498, %v496
          %v551 = vpack.c.b16 %v501, %v499
          %v552 = vpack.c.b16 %v502, %v500
          %v553 = vpack.c.b16 %v505, %v503
          %v554 = vpack.c.b16 %v506, %v504
          %v555 = vpack.c.b16 %v509, %v507
          %v556 = vpack.c.b16 %v510, %v508
          %v557 = vpack.c.b16 %v513, %v511
          %v558 = vpack.c.b16 %v514, %v512
          %v559 = vpack.c.b16 %v517, %v515
          %v560 = vpack.c.b16 %v518, %v516
          %v561 = vpack.c.b16 %v521, %v519
          %v562 = vpack.c.b16 %v522, %v520
          %v563 = vpack.c.b16 %v525, %v523
          %v564 = vpack.c.b16 %v526, %v524
          %v565 = vpack.c.b16 %v529, %v527
          %v566 = vpack.c.b16 %v530, %v528
          %v567 = vpack.c.b16 %v533, %v531
          %v568 = vpack.c.b16 %v534, %v532
          %v569 = vpack.c.b16 %v537, %v535
          %v570 = vpack.c.b16 %v538, %v536
          %v635 = vunpack.c.l.b16 %v411
          %v636 = vunpack.c.l.b16 %v412
          %v637 = vunpack.c.l.b16 %v413
          %v638 = vunpack.c.l.b16 %v414
          %v639 = vunpack.c.l.b16 %v415
          %v640 = vunpack.c.l.b16 %v416
          %v641 = vunpack.c.l.b16 %v417
          %v642 = vunpack.c.l.b16 %v418
          %v643 = vunpack.c.l.b16 %v419
          %v644 = vunpack.c.l.b16 %v420
          %v645 = vunpack.c.l.b16 %v421
          %v646 = vunpack.c.l.b16 %v422
          %v647 = vunpack.c.l.b16 %v423
          %v648 = vunpack.c.l.b16 %v424
          %v649 = vunpack.c.l.b16 %v425
          %v650 = vunpack.c.l.b16 %v426
          %v651 = vunpack.c.l.b16 %v427
          %v652 = vunpack.c.l.b16 %v428
          %v653 = vunpack.c.l.b16 %v429
          %v654 = vunpack.c.l.b16 %v430
          %v655 = vunpack.c.l.b16 %v431
          %v656 = vunpack.c.l.b16 %v432
          %v657 = vunpack.c.l.b16 %v433
          %v658 = vunpack.c.l.b16 %v434
          %v659 = vunpack.c.l.b16 %v435
          %v660 = vunpack.c.l.b16 %v436
          %v661 = vunpack.c.l.b16 %v437
          %v662 = vunpack.c.l.b16 %v438
          %v663 = vunpack.c.l.b16 %v439
          %v664 = vunpack.c.l.b16 %v440
          %v665 = vunpack.c.l.b16 %v441
          %v666 = vunpack.c.l.b16 %v442
          %v667 = vpack.c.b16 %v636, %v635
          %v668 = vpack.c.b16 %v638, %v637
          %v669 = vpack.c.b16 %v640, %v639
          %v670 = vpack.c.b16 %v642, %v641
          %v671 = vpack.c.b16 %v644, %v643
          %v672 = vpack.c.b16 %v646, %v645
          %v673 = vpack.c.b16 %v648, %v647
          %v674 = vpack.c.b16 %v650, %v649
          %v675 = vpack.c.b16 %v652, %v651
          %v676 = vpack.c.b16 %v654, %v653
          %v677 = vpack.c.b16 %v656, %v655
          %v678 = vpack.c.b16 %v658, %v657
          %v679 = vpack.c.b16 %v660, %v659
          %v680 = vpack.c.b16 %v662, %v661
          %v681 = vpack.c.b16 %v664, %v663
          %v682 = vpack.c.b16 %v666, %v665
          %699 = vmatpush.bf16.msra.mxu0 %v674
          %700 = vmatpush.bf16.msra.mxu0 %v673
          %701 = vmatpush.bf16.msra.mxu0 %v672
          %702 = vmatpush.bf16.msra.mxu0 %v671
          %703 = vmatpush.bf16.msra.mxu0 %v670
          %704 = vmatpush.bf16.msra.mxu0 %v669
          %705 = vmatpush.bf16.msra.mxu0 %v668
          %706 = vmatpush.bf16.msra.mxu0 %v667
          %707 = vmatmul.bf16.gmra.mxu0 %v539
          %v708 = vpop.f32.mrf.mxu0
          %v709 = vadd.f32 0.0, %v708
          %v710 = vpop.f32.mrf.mxu0
          %v711 = vadd.f32 0.0, %v710
          %712 = vmatmul.bf16.gmra.mxu0 %v541
          %v713 = vpop.f32.mrf.mxu0
          %v714 = vadd.f32 0.0, %v713
          %v715 = vpop.f32.mrf.mxu0
          %v716 = vadd.f32 0.0, %v715
          %717 = vmatmul.bf16.gmra.mxu0 %v543
          %v718 = vpop.f32.mrf.mxu0
          %v719 = vadd.f32 0.0, %v718
          %v720 = vpop.f32.mrf.mxu0
          %v721 = vadd.f32 0.0, %v720
          %722 = vmatmul.bf16.gmra.mxu0 %v545
          %v723 = vpop.f32.mrf.mxu0
          %v724 = vadd.f32 0.0, %v723
          %v725 = vpop.f32.mrf.mxu0
          %v726 = vadd.f32 0.0, %v725
          %727 = vmatmul.bf16.gmra.mxu0 %v547
          %v728 = vpop.f32.mrf.mxu0
          %v729 = vadd.f32 0.0, %v728
          %v730 = vpop.f32.mrf.mxu0
          %v731 = vadd.f32 0.0, %v730
          %732 = vmatmul.bf16.gmra.mxu0 %v549
          %v733 = vpop.f32.mrf.mxu0
          %v734 = vadd.f32 0.0, %v733
          %v735 = vpop.f32.mrf.mxu0
          %v736 = vadd.f32 0.0, %v735
          %737 = vmatmul.bf16.gmra.mxu0 %v551
          %v738 = vpop.f32.mrf.mxu0
          %v739 = vadd.f32 0.0, %v738
          %v740 = vpop.f32.mrf.mxu0
          %v741 = vadd.f32 0.0, %v740
          %742 = vmatmul.bf16.gmra.mxu0 %v553
          %v743 = vpop.f32.mrf.mxu0
          %v744 = vadd.f32 0.0, %v743
          %v745 = vpop.f32.mrf.mxu0
          %v746 = vadd.f32 0.0, %v745
          %747 = vmatmul.bf16.gmra.mxu0 %v555
          %v748 = vpop.f32.mrf.mxu0
          %v749 = vadd.f32 0.0, %v748
          %v750 = vpop.f32.mrf.mxu0
          %v751 = vadd.f32 0.0, %v750
          %752 = vmatmul.bf16.gmra.mxu0 %v557
          %v753 = vpop.f32.mrf.mxu0
          %v754 = vadd.f32 0.0, %v753
          %v755 = vpop.f32.mrf.mxu0
          %v756 = vadd.f32 0.0, %v755
          %757 = vmatmul.bf16.gmra.mxu0 %v559
          %v758 = vpop.f32.mrf.mxu0
          %v759 = vadd.f32 0.0, %v758
          %v760 = vpop.f32.mrf.mxu0
          %v761 = vadd.f32 0.0, %v760
          %762 = vmatmul.bf16.gmra.mxu0 %v561
          %v763 = vpop.f32.mrf.mxu0
          %v764 = vadd.f32 0.0, %v763
          %v765 = vpop.f32.mrf.mxu0
          %v766 = vadd.f32 0.0, %v765
          %767 = vmatmul.bf16.gmra.mxu0 %v563
          %v768 = vpop.f32.mrf.mxu0
          %v769 = vadd.f32 0.0, %v768
          %v770 = vpop.f32.mrf.mxu0
          %v771 = vadd.f32 0.0, %v770
          %772 = vmatmul.bf16.gmra.mxu0 %v565
          %v773 = vpop.f32.mrf.mxu0
          %v774 = vadd.f32 0.0, %v773
          %v775 = vpop.f32.mrf.mxu0
          %v776 = vadd.f32 0.0, %v775
          %777 = vmatmul.bf16.gmra.mxu0 %v567
          %v778 = vpop.f32.mrf.mxu0
          %v779 = vadd.f32 0.0, %v778
          %v780 = vpop.f32.mrf.mxu0
          %v781 = vadd.f32 0.0, %v780
          %782 = vmatmul.bf16.gmra.mxu0 %v569
          %v783 = vpop.f32.mrf.mxu0
          %v784 = vadd.f32 0.0, %v783
          %v785 = vpop.f32.mrf.mxu0
          %v786 = vadd.f32 0.0, %v785
          %787 = vdwg.mxu0
          %788 = vmatpush.bf16.msra.mxu0 %v682
          %789 = vmatpush.bf16.msra.mxu0 %v681
          %790 = vmatpush.bf16.msra.mxu0 %v680
          %791 = vmatpush.bf16.msra.mxu0 %v679
          %792 = vmatpush.bf16.msra.mxu0 %v678
          %793 = vmatpush.bf16.msra.mxu0 %v677
          %794 = vmatpush.bf16.msra.mxu0 %v676
          %795 = vmatpush.bf16.msra.mxu0 %v675
          %796 = vmatmul.bf16.gmra.mxu0 %v540
          %v797 = vpop.f32.mrf.mxu0
          %v798 = vadd.f32 %v709, %v797
          %v799 = vpop.f32.mrf.mxu0
          %v800 = vadd.f32 %v711, %v799
          %801 = vmatmul.bf16.gmra.mxu0 %v542
          %v802 = vpop.f32.mrf.mxu0
          %v803 = vadd.f32 %v714, %v802
          %v804 = vpop.f32.mrf.mxu0
          %v805 = vadd.f32 %v716, %v804
          %806 = vmatmul.bf16.gmra.mxu0 %v544
          %v807 = vpop.f32.mrf.mxu0
          %v808 = vadd.f32 %v719, %v807
          %v809 = vpop.f32.mrf.mxu0
          %v810 = vadd.f32 %v721, %v809
          %811 = vmatmul.bf16.gmra.mxu0 %v546
          %v812 = vpop.f32.mrf.mxu0
          %v813 = vadd.f32 %v724, %v812
          %v814 = vpop.f32.mrf.mxu0
          %v815 = vadd.f32 %v726, %v814
          %816 = vmatmul.bf16.gmra.mxu0 %v548
          %v817 = vpop.f32.mrf.mxu0
          %v818 = vadd.f32 %v729, %v817
          %v819 = vpop.f32.mrf.mxu0
          %v820 = vadd.f32 %v731, %v819
          %821 = vmatmul.bf16.gmra.mxu0 %v550
          %v822 = vpop.f32.mrf.mxu0
          %v823 = vadd.f32 %v734, %v822
          %v824 = vpop.f32.mrf.mxu0
          %v825 = vadd.f32 %v736, %v824
          %826 = vmatmul.bf16.gmra.mxu0 %v552
          %v827 = vpop.f32.mrf.mxu0
          %v828 = vadd.f32 %v739, %v827
          %v829 = vpop.f32.mrf.mxu0
          %v830 = vadd.f32 %v741, %v829
          %831 = vmatmul.bf16.gmra.mxu0 %v554
          %v832 = vpop.f32.mrf.mxu0
          %v833 = vadd.f32 %v744, %v832
          %v834 = vpop.f32.mrf.mxu0
          %v835 = vadd.f32 %v746, %v834
          %836 = vmatmul.bf16.gmra.mxu0 %v556
          %v837 = vpop.f32.mrf.mxu0
          %v838 = vadd.f32 %v749, %v837
          %v839 = vpop.f32.mrf.mxu0
          %v840 = vadd.f32 %v751, %v839
          %841 = vmatmul.bf16.gmra.mxu0 %v558
          %v842 = vpop.f32.mrf.mxu0
          %v843 = vadd.f32 %v754, %v842
          %v844 = vpop.f32.mrf.mxu0
          %v845 = vadd.f32 %v756, %v844
          %846 = vmatmul.bf16.gmra.mxu0 %v560
          %v847 = vpop.f32.mrf.mxu0
          %v848 = vadd.f32 %v759, %v847
          %v849 = vpop.f32.mrf.mxu0
          %v850 = vadd.f32 %v761, %v849
          %851 = vmatmul.bf16.gmra.mxu0 %v562
          %v852 = vpop.f32.mrf.mxu0
          %v853 = vadd.f32 %v764, %v852
          %v854 = vpop.f32.mrf.mxu0
          %v855 = vadd.f32 %v766, %v854
          %856 = vmatmul.bf16.gmra.mxu0 %v564
          %v857 = vpop.f32.mrf.mxu0
          %v858 = vadd.f32 %v769, %v857
          %v859 = vpop.f32.mrf.mxu0
          %v860 = vadd.f32 %v771, %v859
          %861 = vmatmul.bf16.gmra.mxu0 %v566
          %v862 = vpop.f32.mrf.mxu0
          %v863 = vadd.f32 %v774, %v862
          %v864 = vpop.f32.mrf.mxu0
          %v865 = vadd.f32 %v776, %v864
          %866 = vmatmul.bf16.gmra.mxu0 %v568
          %v867 = vpop.f32.mrf.mxu0
          %v868 = vadd.f32 %v779, %v867
          %v869 = vpop.f32.mrf.mxu0
          %v870 = vadd.f32 %v781, %v869
          %871 = vmatmul.bf16.gmra.mxu0 %v570
          %v872 = vpop.f32.mrf.mxu0
          %v873 = vadd.f32 %v784, %v872
          %v874 = vpop.f32.mrf.mxu0
          %v875 = vadd.f32 %v786, %v874
          %876 = vdwg.mxu0
          %v877 = vld [vmem:[%s367] sm:$0x1]
          %v879 = vperm.slane %v877, 0
          %v881 = vmul.f32 %v879, %v798
          %v882 = vmul.f32 %v879, %v800
          %v883 = vmul.f32 %v879, %v803
          %v884 = vmul.f32 %v879, %v805
          %v885 = vmul.f32 %v879, %v808
          %v886 = vmul.f32 %v879, %v810
          %v887 = vmul.f32 %v879, %v813
          %v888 = vmul.f32 %v879, %v815
          %v889 = vmul.f32 %v879, %v818
          %v890 = vmul.f32 %v879, %v820
          %v891 = vmul.f32 %v879, %v823
          %v892 = vmul.f32 %v879, %v825
          %v893 = vmul.f32 %v879, %v828
          %v894 = vmul.f32 %v879, %v830
          %v895 = vmul.f32 %v879, %v833
          %v896 = vmul.f32 %v879, %v835
          %v897 = vmul.f32 %v879, %v838
          %v898 = vmul.f32 %v879, %v840
          %v899 = vmul.f32 %v879, %v843
          %v900 = vmul.f32 %v879, %v845
          %v901 = vmul.f32 %v879, %v848
          %v902 = vmul.f32 %v879, %v850
          %v903 = vmul.f32 %v879, %v853
          %v904 = vmul.f32 %v879, %v855
          %v905 = vmul.f32 %v879, %v858
          %v906 = vmul.f32 %v879, %v860
          %v907 = vmul.f32 %v879, %v863
          %v908 = vmul.f32 %v879, %v865
          %v909 = vmul.f32 %v879, %v868
          %v910 = vmul.f32 %v879, %v870
          %v911 = vmul.f32 %v879, %v873
          %v912 = vmul.f32 %v879, %v875
          %v913 = vld [vmem:[%s370] sm:$0x1]
          %v915 = vperm.slane %v913, 0
          %v917 = vadd.f32 %v881, %v915
          %v918 = vadd.f32 %v882, %v915
          %v919 = vadd.f32 %v883, %v915
          %v920 = vadd.f32 %v884, %v915
          %v921 = vadd.f32 %v885, %v915
          %v922 = vadd.f32 %v886, %v915
          %v923 = vadd.f32 %v887, %v915
          %v924 = vadd.f32 %v888, %v915
          %v925 = vadd.f32 %v889, %v915
          %v926 = vadd.f32 %v890, %v915
          %v927 = vadd.f32 %v891, %v915
          %v928 = vadd.f32 %v892, %v915
          %v929 = vadd.f32 %v893, %v915
          %v930 = vadd.f32 %v894, %v915
          %v931 = vadd.f32 %v895, %v915
          %v932 = vadd.f32 %v896, %v915
          %v933 = vadd.f32 %v897, %v915
          %v934 = vadd.f32 %v898, %v915
          %v935 = vadd.f32 %v899, %v915
          %v936 = vadd.f32 %v900, %v915
          %v937 = vadd.f32 %v901, %v915
          %v938 = vadd.f32 %v902, %v915
          %v939 = vadd.f32 %v903, %v915
          %v940 = vadd.f32 %v904, %v915
          %v941 = vadd.f32 %v905, %v915
          %v942 = vadd.f32 %v906, %v915
          %v943 = vadd.f32 %v907, %v915
          %v944 = vadd.f32 %v908, %v915
          %v945 = vadd.f32 %v909, %v915
          %v946 = vadd.f32 %v910, %v915
          %v947 = vadd.f32 %v911, %v915
          %v948 = vadd.f32 %v912, %v915
          %vm949 = vcmask 64512
          %950 = vst.msk [vmem:[#allocation2] sm:$0xff] %vm949, %v917
          %951 = vst.msk [vmem:[#allocation2 + $0x8] sm:$0xff] %vm949, %v918
          %952 = vst.msk [vmem:[#allocation2 + $0x10] sm:$0xff] %vm949, %v919
          %953 = vst.msk [vmem:[#allocation2 + $0x18] sm:$0xff] %vm949, %v920
          %954 = vst.msk [vmem:[#allocation2 + $0x20] sm:$0xff] %vm949, %v921
          %955 = vst.msk [vmem:[#allocation2 + $0x28] sm:$0xff] %vm949, %v922
          %956 = vst.msk [vmem:[#allocation2 + $0x30] sm:$0xff] %vm949, %v923
          %957 = vst.msk [vmem:[#allocation2 + $0x38] sm:$0xff] %vm949, %v924
          %958 = vst.msk [vmem:[#allocation2 + $0x40] sm:$0xff] %vm949, %v925
          %959 = vst.msk [vmem:[#allocation2 + $0x48] sm:$0xff] %vm949, %v926
          %960 = vst.msk [vmem:[#allocation2 + $0x50] sm:$0xff] %vm949, %v927
          %961 = vst.msk [vmem:[#allocation2 + $0x58] sm:$0xff] %vm949, %v928
          %962 = vst.msk [vmem:[#allocation2 + $0x60] sm:$0xff] %vm949, %v929
          %963 = vst.msk [vmem:[#allocation2 + $0x68] sm:$0xff] %vm949, %v930
          %964 = vst.msk [vmem:[#allocation2 + $0x70] sm:$0xff] %vm949, %v931
          %965 = vst.msk [vmem:[#allocation2 + $0x78] sm:$0xff] %vm949, %v932
          %966 = vst.msk [vmem:[#allocation2 + $0x80] sm:$0xff] %vm949, %v933
          %967 = vst.msk [vmem:[#allocation2 + $0x88] sm:$0xff] %vm949, %v934
          %968 = vst.msk [vmem:[#allocation2 + $0x90] sm:$0xff] %vm949, %v935
          %969 = vst.msk [vmem:[#allocation2 + $0x98] sm:$0xff] %vm949, %v936
          %970 = vst.msk [vmem:[#allocation2 + $0xa0] sm:$0xff] %vm949, %v937
          %971 = vst.msk [vmem:[#allocation2 + $0xa8] sm:$0xff] %vm949, %v938
          %972 = vst.msk [vmem:[#allocation2 + $0xb0] sm:$0xff] %vm949, %v939
          %973 = vst.msk [vmem:[#allocation2 + $0xb8] sm:$0xff] %vm949, %v940
          %974 = vst.msk [vmem:[#allocation2 + $0xc0] sm:$0xff] %vm949, %v941
          %975 = vst.msk [vmem:[#allocation2 + $0xc8] sm:$0xff] %vm949, %v942
          %976 = vst.msk [vmem:[#allocation2 + $0xd0] sm:$0xff] %vm949, %v943
          %977 = vst.msk [vmem:[#allocation2 + $0xd8] sm:$0xff] %vm949, %v944
          %978 = vst.msk [vmem:[#allocation2 + $0xe0] sm:$0xff] %vm949, %v945
          %979 = vst.msk [vmem:[#allocation2 + $0xe8] sm:$0xff] %vm949, %v946
          %980 = vst.msk [vmem:[#allocation2 + $0xf0] sm:$0xff] %vm949, %v947
          %981 = vst.msk [vmem:[#allocation2 + $0xf8] sm:$0xff] %vm949, %v948
        $region56: #{tpu_custom_call.1} parent=43 // pred_fallthru
          _
        %v982 = vld [vmem:[%s323] sm:$0xff]
        %v983 = vld [vmem:[%s323 + $0x8] sm:$0xff]
        %v984 = vld [vmem:[%s323 + $0x10] sm:$0xff]
        %v985 = vld [vmem:[%s323 + $0x18] sm:$0xff]
        %v986 = vld [vmem:[%s323 + $0x20] sm:$0xff]
        %v987 = vld [vmem:[%s323 + $0x28] sm:$0xff]
        %v988 = vld [vmem:[%s323 + $0x30] sm:$0xff]
        %v989 = vld [vmem:[%s323 + $0x38] sm:$0xff]
        %v990 = vld [vmem:[%s323 + $0x40] sm:$0xff]
        %v991 = vld [vmem:[%s323 + $0x48] sm:$0xff]
        %v992 = vld [vmem:[%s323 + $0x50] sm:$0xff]
        %v993 = vld [vmem:[%s323 + $0x58] sm:$0xff]
        %v994 = vld [vmem:[%s323 + $0x60] sm:$0xff]
        %v995 = vld [vmem:[%s323 + $0x68] sm:$0xff]
        %v996 = vld [vmem:[%s323 + $0x70] sm:$0xff]
        %v997 = vld [vmem:[%s323 + $0x78] sm:$0xff]
        %v998 = vld [vmem:[%s323 + $0x80] sm:$0xff]
        %v999 = vld [vmem:[%s323 + $0x88] sm:$0xff]
        %v1000 = vld [vmem:[%s323 + $0x90] sm:$0xff]
        %v1001 = vld [vmem:[%s323 + $0x98] sm:$0xff]
        %v1002 = vld [vmem:[%s323 + $0xa0] sm:$0xff]
        %v1003 = vld [vmem:[%s323 + $0xa8] sm:$0xff]
        %v1004 = vld [vmem:[%s323 + $0xb0] sm:$0xff]
        %v1005 = vld [vmem:[%s323 + $0xb8] sm:$0xff]
        %v1006 = vld [vmem:[%s323 + $0xc0] sm:$0xff]
        %v1007 = vld [vmem:[%s323 + $0xc8] sm:$0xff]
        %v1008 = vld [vmem:[%s323 + $0xd0] sm:$0xff]
        %v1009 = vld [vmem:[%s323 + $0xd8] sm:$0xff]
        %v1010 = vld [vmem:[%s323 + $0xe0] sm:$0xff]
        %v1011 = vld [vmem:[%s323 + $0xe8] sm:$0xff]
        %v1012 = vld [vmem:[%s323 + $0xf0] sm:$0xff]
        %v1013 = vld [vmem:[%s323 + $0xf8] sm:$0xff]
        %s1014 = smul.u32 %s33, 2
        %s1015 = smul.addr %s1014, 4
        %s1016 = scalar_lea.vmem %s5, %s1015
        %v1017 = vld [vmem:[%s1016] sm:$0xff]
        %v1018 = vld [vmem:[#allocation2] sm:$0xff]
        %v1019 = vld [vmem:[#allocation2 + $0x8] sm:$0xff]
        %v1020 = vld [vmem:[#allocation2 + $0x10] sm:$0xff]
        %v1021 = vld [vmem:[#allocation2 + $0x18] sm:$0xff]
        %v1022 = vld [vmem:[#allocation2 + $0x20] sm:$0xff]
        %v1023 = vld [vmem:[#allocation2 + $0x28] sm:$0xff]
        %v1024 = vld [vmem:[#allocation2 + $0x30] sm:$0xff]
        %v1025 = vld [vmem:[#allocation2 + $0x38] sm:$0xff]
        %v1026 = vld [vmem:[#allocation2 + $0x40] sm:$0xff]
        %v1027 = vld [vmem:[#allocation2 + $0x48] sm:$0xff]
        %v1028 = vld [vmem:[#allocation2 + $0x50] sm:$0xff]
        %v1029 = vld [vmem:[#allocation2 + $0x58] sm:$0xff]
        %v1030 = vld [vmem:[#allocation2 + $0x60] sm:$0xff]
        %v1031 = vld [vmem:[#allocation2 + $0x68] sm:$0xff]
        %v1032 = vld [vmem:[#allocation2 + $0x70] sm:$0xff]
        %v1033 = vld [vmem:[#allocation2 + $0x78] sm:$0xff]
        %v1034 = vld [vmem:[#allocation2 + $0x80] sm:$0xff]
        %v1035 = vld [vmem:[#allocation2 + $0x88] sm:$0xff]
        %v1036 = vld [vmem:[#allocation2 + $0x90] sm:$0xff]
        %v1037 = vld [vmem:[#allocation2 + $0x98] sm:$0xff]
        %v1038 = vld [vmem:[#allocation2 + $0xa0] sm:$0xff]
        %v1039 = vld [vmem:[#allocation2 + $0xa8] sm:$0xff]
        %v1040 = vld [vmem:[#allocation2 + $0xb0] sm:$0xff]
        %v1041 = vld [vmem:[#allocation2 + $0xb8] sm:$0xff]
        %v1042 = vld [vmem:[#allocation2 + $0xc0] sm:$0xff]
        %v1043 = vld [vmem:[#allocation2 + $0xc8] sm:$0xff]
        %v1044 = vld [vmem:[#allocation2 + $0xd0] sm:$0xff]
        %v1045 = vld [vmem:[#allocation2 + $0xd8] sm:$0xff]
        %v1046 = vld [vmem:[#allocation2 + $0xe0] sm:$0xff]
        %v1047 = vld [vmem:[#allocation2 + $0xe8] sm:$0xff]
        %v1048 = vld [vmem:[#allocation2 + $0xf0] sm:$0xff]
        %v1049 = vld [vmem:[#allocation2 + $0xf8] sm:$0xff]
        %v1050 = vpack.c.bf16 %v1019, %v1018
        %v1051 = vpack.c.bf16 %v1021, %v1020
        %v1052 = vpack.c.bf16 %v1023, %v1022
        %v1053 = vpack.c.bf16 %v1025, %v1024
        %v1054 = vpack.c.bf16 %v1027, %v1026
        %v1055 = vpack.c.bf16 %v1029, %v1028
        %v1056 = vpack.c.bf16 %v1031, %v1030
        %v1057 = vpack.c.bf16 %v1033, %v1032
        %v1058 = vpack.c.bf16 %v1035, %v1034
        %v1059 = vpack.c.bf16 %v1037, %v1036
        %v1060 = vpack.c.bf16 %v1039, %v1038
        %v1061 = vpack.c.bf16 %v1041, %v1040
        %v1062 = vpack.c.bf16 %v1043, %v1042
        %v1063 = vpack.c.bf16 %v1045, %v1044
        %v1064 = vpack.c.bf16 %v1047, %v1046
        %v1065 = vpack.c.bf16 %v1049, %v1048
        %v1067 = vunpack.c.l.b16 %v1017
        %v1068 = vunpack.c.h.b16 %v1017
        %v1069 = vpack.c.b16 %v1067, %v1067
        %v1070 = vpack.c.b16 %v1068, %v1068
        %vm1071 = vcmask 64512
        %v1073 = vsel %vm1071, %v1050, 0
        %v1076 = vsel %vm1071, %v1051, 0
        %v1079 = vsel %vm1071, %v1052, 0
        %v1082 = vsel %vm1071, %v1053, 0
        %v1085 = vsel %vm1071, %v1054, 0
        %v1088 = vsel %vm1071, %v1055, 0
        %v1091 = vsel %vm1071, %v1056, 0
        %v1094 = vsel %vm1071, %v1057, 0
        %v1097 = vsel %vm1071, %v1058, 0
        %v1100 = vsel %vm1071, %v1059, 0
        %v1103 = vsel %vm1071, %v1060, 0
        %v1106 = vsel %vm1071, %v1061, 0
        %v1109 = vsel %vm1071, %v1062, 0
        %v1112 = vsel %vm1071, %v1063, 0
        %v1115 = vsel %vm1071, %v1064, 0
        %v1118 = vsel %vm1071, %v1065, 0
        %vm1120 = vcmask 1043456
        %v1122 = vsel %vm1120, %v1069, 0
        %v1125 = vsel %vm1120, %v1070, 0
        %1127 = vmatpush.bf16.msra.mxu0 0
        %1128 = vmatpush.bf16.msra.mxu0 0
        %1129 = vmatpush.bf16.msra.mxu0 0
        %1130 = vmatpush.bf16.msra.mxu0 0
        %1131 = vmatpush.bf16.msra.mxu0 0
        %1132 = vmatpush.bf16.msra.mxu0 0
        %1133 = vmatpush.bf16.msra.mxu0 0
        %1134 = vmatpush.bf16.msra.mxu0 %v1122
        %1135 = vmatmul.bf16.gmra.mxu0 %v1073
        %v1136 = vpop.f32.mrf.mxu0
        %v1137 = vadd.f32 0.0, %v1136
        %v1138 = vpop.f32.mrf.mxu0
        %v1139 = vadd.f32 0.0, %v1138
        %1140 = vmatmul.bf16.gmra.mxu0 %v1076
        %v1141 = vpop.f32.mrf.mxu0
        %v1142 = vadd.f32 0.0, %v1141
        %v1143 = vpop.f32.mrf.mxu0
        %v1144 = vadd.f32 0.0, %v1143
        %1145 = vmatmul.bf16.gmra.mxu0 %v1079
        %v1146 = vpop.f32.mrf.mxu0
        %v1147 = vadd.f32 0.0, %v1146
        %v1148 = vpop.f32.mrf.mxu0
        %v1149 = vadd.f32 0.0, %v1148
        %1150 = vmatmul.bf16.gmra.mxu0 %v1082
        %v1151 = vpop.f32.mrf.mxu0
        %v1152 = vadd.f32 0.0, %v1151
        %v1153 = vpop.f32.mrf.mxu0
        %v1154 = vadd.f32 0.0, %v1153
        %1155 = vmatmul.bf16.gmra.mxu0 %v1085
        %v1156 = vpop.f32.mrf.mxu0
        %v1157 = vadd.f32 0.0, %v1156
        %v1158 = vpop.f32.mrf.mxu0
        %v1159 = vadd.f32 0.0, %v1158
        %1160 = vmatmul.bf16.gmra.mxu0 %v1088
        %v1161 = vpop.f32.mrf.mxu0
        %v1162 = vadd.f32 0.0, %v1161
        %v1163 = vpop.f32.mrf.mxu0
        %v1164 = vadd.f32 0.0, %v1163
        %1165 = vmatmul.bf16.gmra.mxu0 %v1091
        %v1166 = vpop.f32.mrf.mxu0
        %v1167 = vadd.f32 0.0, %v1166
        %v1168 = vpop.f32.mrf.mxu0
        %v1169 = vadd.f32 0.0, %v1168
        %1170 = vmatmul.bf16.gmra.mxu0 %v1094
        %v1171 = vpop.f32.mrf.mxu0
        %v1172 = vadd.f32 0.0, %v1171
        %v1173 = vpop.f32.mrf.mxu0
        %v1174 = vadd.f32 0.0, %v1173
        %1175 = vmatmul.bf16.gmra.mxu0 %v1097
        %v1176 = vpop.f32.mrf.mxu0
        %v1177 = vadd.f32 0.0, %v1176
        %v1178 = vpop.f32.mrf.mxu0
        %v1179 = vadd.f32 0.0, %v1178
        %1180 = vmatmul.bf16.gmra.mxu0 %v1100
        %v1181 = vpop.f32.mrf.mxu0
        %v1182 = vadd.f32 0.0, %v1181
        %v1183 = vpop.f32.mrf.mxu0
        %v1184 = vadd.f32 0.0, %v1183
        %1185 = vmatmul.bf16.gmra.mxu0 %v1103
        %v1186 = vpop.f32.mrf.mxu0
        %v1187 = vadd.f32 0.0, %v1186
        %v1188 = vpop.f32.mrf.mxu0
        %v1189 = vadd.f32 0.0, %v1188
        %1190 = vmatmul.bf16.gmra.mxu0 %v1106
        %v1191 = vpop.f32.mrf.mxu0
        %v1192 = vadd.f32 0.0, %v1191
        %v1193 = vpop.f32.mrf.mxu0
        %v1194 = vadd.f32 0.0, %v1193
        %1195 = vmatmul.bf16.gmra.mxu0 %v1109
        %v1196 = vpop.f32.mrf.mxu0
        %v1197 = vadd.f32 0.0, %v1196
        %v1198 = vpop.f32.mrf.mxu0
        %v1199 = vadd.f32 0.0, %v1198
        %1200 = vmatmul.bf16.gmra.mxu0 %v1112
        %v1201 = vpop.f32.mrf.mxu0
        %v1202 = vadd.f32 0.0, %v1201
        %v1203 = vpop.f32.mrf.mxu0
        %v1204 = vadd.f32 0.0, %v1203
        %1205 = vmatmul.bf16.gmra.mxu0 %v1115
        %v1206 = vpop.f32.mrf.mxu0
        %v1207 = vadd.f32 0.0, %v1206
        %v1208 = vpop.f32.mrf.mxu0
        %v1209 = vadd.f32 0.0, %v1208
        %1210 = vmatmul.bf16.gmra.mxu0 %v1118
        %v1211 = vpop.f32.mrf.mxu0
        %v1212 = vadd.f32 0.0, %v1211
        %v1213 = vpop.f32.mrf.mxu0
        %v1214 = vadd.f32 0.0, %v1213
        %1215 = vdwg.mxu0
        %1216 = vmatpush.bf16.msra.mxu0 0
        %1217 = vmatpush.bf16.msra.mxu0 0
        %1218 = vmatpush.bf16.msra.mxu0 0
        %1219 = vmatpush.bf16.msra.mxu0 0
        %1220 = vmatpush.bf16.msra.mxu0 0
        %1221 = vmatpush.bf16.msra.mxu0 0
        %1222 = vmatpush.bf16.msra.mxu0 0
        %1223 = vmatpush.bf16.msra.mxu0 %v1125
        %1224 = vmatmul.bf16.gmra.mxu0 %v1073
        %v1225 = vpop.f32.mrf.mxu0
        %v1226 = vadd.f32 0.0, %v1225
        %v1227 = vpop.f32.mrf.mxu0
        %v1228 = vadd.f32 0.0, %v1227
        %1229 = vmatmul.bf16.gmra.mxu0 %v1076
        %v1230 = vpop.f32.mrf.mxu0
        %v1231 = vadd.f32 0.0, %v1230
        %v1232 = vpop.f32.mrf.mxu0
        %v1233 = vadd.f32 0.0, %v1232
        %1234 = vmatmul.bf16.gmra.mxu0 %v1079
        %v1235 = vpop.f32.mrf.mxu0
        %v1236 = vadd.f32 0.0, %v1235
        %v1237 = vpop.f32.mrf.mxu0
        %v1238 = vadd.f32 0.0, %v1237
        %1239 = vmatmul.bf16.gmra.mxu0 %v1082
        %v1240 = vpop.f32.mrf.mxu0
        %v1241 = vadd.f32 0.0, %v1240
        %v1242 = vpop.f32.mrf.mxu0
        %v1243 = vadd.f32 0.0, %v1242
        %1244 = vmatmul.bf16.gmra.mxu0 %v1085
        %v1245 = vpop.f32.mrf.mxu0
        %v1246 = vadd.f32 0.0, %v1245
        %v1247 = vpop.f32.mrf.mxu0
        %v1248 = vadd.f32 0.0, %v1247
        %1249 = vmatmul.bf16.gmra.mxu0 %v1088
        %v1250 = vpop.f32.mrf.mxu0
        %v1251 = vadd.f32 0.0, %v1250
        %v1252 = vpop.f32.mrf.mxu0
        %v1253 = vadd.f32 0.0, %v1252
        %1254 = vmatmul.bf16.gmra.mxu0 %v1091
        %v1255 = vpop.f32.mrf.mxu0
        %v1256 = vadd.f32 0.0, %v1255
        %v1257 = vpop.f32.mrf.mxu0
        %v1258 = vadd.f32 0.0, %v1257
        %1259 = vmatmul.bf16.gmra.mxu0 %v1094
        %v1260 = vpop.f32.mrf.mxu0
        %v1261 = vadd.f32 0.0, %v1260
        %v1262 = vpop.f32.mrf.mxu0
        %v1263 = vadd.f32 0.0, %v1262
        %1264 = vmatmul.bf16.gmra.mxu0 %v1097
        %v1265 = vpop.f32.mrf.mxu0
        %v1266 = vadd.f32 0.0, %v1265
        %v1267 = vpop.f32.mrf.mxu0
        %v1268 = vadd.f32 0.0, %v1267
        %1269 = vmatmul.bf16.gmra.mxu0 %v1100
        %v1270 = vpop.f32.mrf.mxu0
        %v1271 = vadd.f32 0.0, %v1270
        %v1272 = vpop.f32.mrf.mxu0
        %v1273 = vadd.f32 0.0, %v1272
        %1274 = vmatmul.bf16.gmra.mxu0 %v1103
        %v1275 = vpop.f32.mrf.mxu0
        %v1276 = vadd.f32 0.0, %v1275
        %v1277 = vpop.f32.mrf.mxu0
        %v1278 = vadd.f32 0.0, %v1277
        %1279 = vmatmul.bf16.gmra.mxu0 %v1106
        %v1280 = vpop.f32.mrf.mxu0
        %v1281 = vadd.f32 0.0, %v1280
        %v1282 = vpop.f32.mrf.mxu0
        %v1283 = vadd.f32 0.0, %v1282
        %1284 = vmatmul.bf16.gmra.mxu0 %v1109
        %v1285 = vpop.f32.mrf.mxu0
        %v1286 = vadd.f32 0.0, %v1285
        %v1287 = vpop.f32.mrf.mxu0
        %v1288 = vadd.f32 0.0, %v1287
        %1289 = vmatmul.bf16.gmra.mxu0 %v1112
        %v1290 = vpop.f32.mrf.mxu0
        %v1291 = vadd.f32 0.0, %v1290
        %v1292 = vpop.f32.mrf.mxu0
        %v1293 = vadd.f32 0.0, %v1292
        %1294 = vmatmul.bf16.gmra.mxu0 %v1115
        %v1295 = vpop.f32.mrf.mxu0
        %v1296 = vadd.f32 0.0, %v1295
        %v1297 = vpop.f32.mrf.mxu0
        %v1298 = vadd.f32 0.0, %v1297
        %1299 = vmatmul.bf16.gmra.mxu0 %v1118
        %v1300 = vpop.f32.mrf.mxu0
        %v1301 = vadd.f32 0.0, %v1300
        %v1302 = vpop.f32.mrf.mxu0
        %v1303 = vadd.f32 0.0, %v1302
        %1304 = vdwg.mxu0
        %v1337 = vunpack.c.l.b16 %v375
        %v1338 = vunpack.c.h.b16 %v375
        %v1339 = vunpack.c.l.b16 %v376
        %v1340 = vunpack.c.h.b16 %v376
        %v1341 = vunpack.c.l.b16 %v377
        %v1342 = vunpack.c.h.b16 %v377
        %v1343 = vunpack.c.l.b16 %v378
        %v1344 = vunpack.c.h.b16 %v378
        %v1345 = vunpack.c.l.b16 %v379
        %v1346 = vunpack.c.h.b16 %v379
        %v1347 = vunpack.c.l.b16 %v380
        %v1348 = vunpack.c.h.b16 %v380
        %v1349 = vunpack.c.l.b16 %v381
        %v1350 = vunpack.c.h.b16 %v381
        %v1351 = vunpack.c.l.b16 %v382
        %v1352 = vunpack.c.h.b16 %v382
        %v1353 = vunpack.c.l.b16 %v383
        %v1354 = vunpack.c.h.b16 %v383
        %v1355 = vunpack.c.l.b16 %v384
        %v1356 = vunpack.c.h.b16 %v384
        %v1357 = vunpack.c.l.b16 %v385
        %v1358 = vunpack.c.h.b16 %v385
        %v1359 = vunpack.c.l.b16 %v386
        %v1360 = vunpack.c.h.b16 %v386
        %v1361 = vunpack.c.l.b16 %v387
        %v1362 = vunpack.c.h.b16 %v387
        %v1363 = vunpack.c.l.b16 %v388
        %v1364 = vunpack.c.h.b16 %v388
        %v1365 = vunpack.c.l.b16 %v389
        %v1366 = vunpack.c.h.b16 %v389
        %v1367 = vunpack.c.l.b16 %v390
        %v1368 = vunpack.c.h.b16 %v390
        %v1369 = vunpack.c.l.b16 %v391
        %v1370 = vunpack.c.h.b16 %v391
        %v1371 = vunpack.c.l.b16 %v392
        %v1372 = vunpack.c.h.b16 %v392
        %v1373 = vunpack.c.l.b16 %v393
        %v1374 = vunpack.c.h.b16 %v393
        %v1375 = vunpack.c.l.b16 %v394
        %v1376 = vunpack.c.h.b16 %v394
        %v1377 = vunpack.c.l.b16 %v395
        %v1378 = vunpack.c.h.b16 %v395
        %v1379 = vunpack.c.l.b16 %v396
        %v1380 = vunpack.c.h.b16 %v396
        %v1381 = vunpack.c.l.b16 %v397
        %v1382 = vunpack.c.h.b16 %v397
        %v1383 = vunpack.c.l.b16 %v398
        %v1384 = vunpack.c.h.b16 %v398
        %v1385 = vunpack.c.l.b16 %v399
        %v1386 = vunpack.c.h.b16 %v399
        %v1387 = vunpack.c.l.b16 %v400
        %v1388 = vunpack.c.h.b16 %v400
        %v1389 = vunpack.c.l.b16 %v401
        %v1390 = vunpack.c.h.b16 %v401
        %v1391 = vunpack.c.l.b16 %v402
        %v1392 = vunpack.c.h.b16 %v402
        %v1393 = vunpack.c.l.b16 %v403
        %v1394 = vunpack.c.h.b16 %v403
        %v1395 = vunpack.c.l.b16 %v404
        %v1396 = vunpack.c.h.b16 %v404
        %v1397 = vunpack.c.l.b16 %v405
        %v1398 = vunpack.c.h.b16 %v405
        %v1399 = vunpack.c.l.b16 %v406
        %v1400 = vunpack.c.h.b16 %v406
        %v1401 = vpack.c.b16 %v1339, %v1337
        %v1402 = vpack.c.b16 %v1340, %v1338
        %v1403 = vpack.c.b16 %v1343, %v1341
        %v1404 = vpack.c.b16 %v1344, %v1342
        %v1405 = vpack.c.b16 %v1347, %v1345
        %v1406 = vpack.c.b16 %v1348, %v1346
        %v1407 = vpack.c.b16 %v1351, %v1349
        %v1408 = vpack.c.b16 %v1352, %v1350
        %v1409 = vpack.c.b16 %v1355, %v1353
        %v1410 = vpack.c.b16 %v1356, %v1354
        %v1411 = vpack.c.b16 %v1359, %v1357
        %v1412 = vpack.c.b16 %v1360, %v1358
        %v1413 = vpack.c.b16 %v1363, %v1361
        %v1414 = vpack.c.b16 %v1364, %v1362
        %v1415 = vpack.c.b16 %v1367, %v1365
        %v1416 = vpack.c.b16 %v1368, %v1366
        %v1417 = vpack.c.b16 %v1371, %v1369
        %v1418 = vpack.c.b16 %v1372, %v1370
        %v1419 = vpack.c.b16 %v1375, %v1373
        %v1420 = vpack.c.b16 %v1376, %v1374
        %v1421 = vpack.c.b16 %v1379, %v1377
        %v1422 = vpack.c.b16 %v1380, %v1378
        %v1423 = vpack.c.b16 %v1383, %v1381
        %v1424 = vpack.c.b16 %v1384, %v1382
        %v1425 = vpack.c.b16 %v1387, %v1385
        %v1426 = vpack.c.b16 %v1388, %v1386
        %v1427 = vpack.c.b16 %v1391, %v1389
        %v1428 = vpack.c.b16 %v1392, %v1390
        %v1429 = vpack.c.b16 %v1395, %v1393
        %v1430 = vpack.c.b16 %v1396, %v1394
        %v1431 = vpack.c.b16 %v1399, %v1397
        %v1432 = vpack.c.b16 %v1400, %v1398
        %v1497 = vunpack.c.l.b16 %v982
        %v1498 = vunpack.c.h.b16 %v982
        %v1499 = vunpack.c.l.b16 %v983
        %v1500 = vunpack.c.h.b16 %v983
        %v1501 = vunpack.c.l.b16 %v984
        %v1502 = vunpack.c.h.b16 %v984
        %v1503 = vunpack.c.l.b16 %v985
        %v1504 = vunpack.c.h.b16 %v985
        %v1505 = vunpack.c.l.b16 %v986
        %v1506 = vunpack.c.h.b16 %v986
        %v1507 = vunpack.c.l.b16 %v987
        %v1508 = vunpack.c.h.b16 %v987
        %v1509 = vunpack.c.l.b16 %v988
        %v1510 = vunpack.c.h.b16 %v988
        %v1511 = vunpack.c.l.b16 %v989
        %v1512 = vunpack.c.h.b16 %v989
        %v1513 = vunpack.c.l.b16 %v990
        %v1514 = vunpack.c.h.b16 %v990
        %v1515 = vunpack.c.l.b16 %v991
        %v1516 = vunpack.c.h.b16 %v991
        %v1517 = vunpack.c.l.b16 %v992
        %v1518 = vunpack.c.h.b16 %v992
        %v1519 = vunpack.c.l.b16 %v993
        %v1520 = vunpack.c.h.b16 %v993
        %v1521 = vunpack.c.l.b16 %v994
        %v1522 = vunpack.c.h.b16 %v994
        %v1523 = vunpack.c.l.b16 %v995
        %v1524 = vunpack.c.h.b16 %v995
        %v1525 = vunpack.c.l.b16 %v996
        %v1526 = vunpack.c.h.b16 %v996
        %v1527 = vunpack.c.l.b16 %v997
        %v1528 = vunpack.c.h.b16 %v997
        %v1529 = vunpack.c.l.b16 %v998
        %v1530 = vunpack.c.h.b16 %v998
        %v1531 = vunpack.c.l.b16 %v999
        %v1532 = vunpack.c.h.b16 %v999
        %v1533 = vunpack.c.l.b16 %v1000
        %v1534 = vunpack.c.h.b16 %v1000
        %v1535 = vunpack.c.l.b16 %v1001
        %v1536 = vunpack.c.h.b16 %v1001
        %v1537 = vunpack.c.l.b16 %v1002
        %v1538 = vunpack.c.h.b16 %v1002
        %v1539 = vunpack.c.l.b16 %v1003
        %v1540 = vunpack.c.h.b16 %v1003
        %v1541 = vunpack.c.l.b16 %v1004
        %v1542 = vunpack.c.h.b16 %v1004
        %v1543 = vunpack.c.l.b16 %v1005
        %v1544 = vunpack.c.h.b16 %v1005
        %v1545 = vunpack.c.l.b16 %v1006
        %v1546 = vunpack.c.h.b16 %v1006
        %v1547 = vunpack.c.l.b16 %v1007
        %v1548 = vunpack.c.h.b16 %v1007
        %v1549 = vunpack.c.l.b16 %v1008
        %v1550 = vunpack.c.h.b16 %v1008
        %v1551 = vunpack.c.l.b16 %v1009
        %v1552 = vunpack.c.h.b16 %v1009
        %v1553 = vunpack.c.l.b16 %v1010
        %v1554 = vunpack.c.h.b16 %v1010
        %v1555 = vunpack.c.l.b16 %v1011
        %v1556 = vunpack.c.h.b16 %v1011
        %v1557 = vunpack.c.l.b16 %v1012
        %v1558 = vunpack.c.h.b16 %v1012
        %v1559 = vunpack.c.l.b16 %v1013
        %v1560 = vunpack.c.h.b16 %v1013
        %v1561 = vpack.c.b16 %v1499, %v1497
        %v1562 = vpack.c.b16 %v1500, %v1498
        %v1563 = vpack.c.b16 %v1503, %v1501
        %v1564 = vpack.c.b16 %v1504, %v1502
        %v1565 = vpack.c.b16 %v1507, %v1505
        %v1566 = vpack.c.b16 %v1508, %v1506
        %v1567 = vpack.c.b16 %v1511, %v1509
        %v1568 = vpack.c.b16 %v1512, %v1510
        %v1569 = vpack.c.b16 %v1515, %v1513
        %v1570 = vpack.c.b16 %v1516, %v1514
        %v1571 = vpack.c.b16 %v1519, %v1517
        %v1572 = vpack.c.b16 %v1520, %v1518
        %v1573 = vpack.c.b16 %v1523, %v1521
        %v1574 = vpack.c.b16 %v1524, %v1522
        %v1575 = vpack.c.b16 %v1527, %v1525
        %v1576 = vpack.c.b16 %v1528, %v1526
        %v1577 = vpack.c.b16 %v1531, %v1529
        %v1578 = vpack.c.b16 %v1532, %v1530
        %v1579 = vpack.c.b16 %v1535, %v1533
        %v1580 = vpack.c.b16 %v1536, %v1534
        %v1581 = vpack.c.b16 %v1539, %v1537
        %v1582 = vpack.c.b16 %v1540, %v1538
        %v1583 = vpack.c.b16 %v1543, %v1541
        %v1584 = vpack.c.b16 %v1544, %v1542
        %v1585 = vpack.c.b16 %v1547, %v1545
        %v1586 = vpack.c.b16 %v1548, %v1546
        %v1587 = vpack.c.b16 %v1551, %v1549
        %v1588 = vpack.c.b16 %v1552, %v1550
        %v1589 = vpack.c.b16 %v1555, %v1553
        %v1590 = vpack.c.b16 %v1556, %v1554
        %v1591 = vpack.c.b16 %v1559, %v1557
        %v1592 = vpack.c.b16 %v1560, %v1558
        %1625 = vmatpush.bf16.msra.mxu0 %v1575
        %1626 = vmatpush.bf16.msra.mxu0 %v1573
        %1627 = vmatpush.bf16.msra.mxu0 %v1571
        %1628 = vmatpush.bf16.msra.mxu0 %v1569
        %1629 = vmatpush.bf16.msra.mxu0 %v1567
        %1630 = vmatpush.bf16.msra.mxu0 %v1565
        %1631 = vmatpush.bf16.msra.mxu0 %v1563
        %1632 = vmatpush.bf16.msra.mxu0 %v1561
        %1633 = vmatmul.bf16.gmra.mxu0 %v1401
        %v1634 = vpop.f32.mrf.mxu0
        %v1635 = vadd.f32 %v1137, %v1634
        %v1636 = vpop.f32.mrf.mxu0
        %v1637 = vadd.f32 %v1139, %v1636
        %1638 = vmatmul.bf16.gmra.mxu0 %v1403
        %v1639 = vpop.f32.mrf.mxu0
        %v1640 = vadd.f32 %v1142, %v1639
        %v1641 = vpop.f32.mrf.mxu0
        %v1642 = vadd.f32 %v1144, %v1641
        %1643 = vmatmul.bf16.gmra.mxu0 %v1405
        %v1644 = vpop.f32.mrf.mxu0
        %v1645 = vadd.f32 %v1147, %v1644
        %v1646 = vpop.f32.mrf.mxu0
        %v1647 = vadd.f32 %v1149, %v1646
        %1648 = vmatmul.bf16.gmra.mxu0 %v1407
        %v1649 = vpop.f32.mrf.mxu0
        %v1650 = vadd.f32 %v1152, %v1649
        %v1651 = vpop.f32.mrf.mxu0
        %v1652 = vadd.f32 %v1154, %v1651
        %1653 = vmatmul.bf16.gmra.mxu0 %v1409
        %v1654 = vpop.f32.mrf.mxu0
        %v1655 = vadd.f32 %v1157, %v1654
        %v1656 = vpop.f32.mrf.mxu0
        %v1657 = vadd.f32 %v1159, %v1656
        %1658 = vmatmul.bf16.gmra.mxu0 %v1411
        %v1659 = vpop.f32.mrf.mxu0
        %v1660 = vadd.f32 %v1162, %v1659
        %v1661 = vpop.f32.mrf.mxu0
        %v1662 = vadd.f32 %v1164, %v1661
        %1663 = vmatmul.bf16.gmra.mxu0 %v1413
        %v1664 = vpop.f32.mrf.mxu0
        %v1665 = vadd.f32 %v1167, %v1664
        %v1666 = vpop.f32.mrf.mxu0
        %v1667 = vadd.f32 %v1169, %v1666
        %1668 = vmatmul.bf16.gmra.mxu0 %v1415
        %v1669 = vpop.f32.mrf.mxu0
        %v1670 = vadd.f32 %v1172, %v1669
        %v1671 = vpop.f32.mrf.mxu0
        %v1672 = vadd.f32 %v1174, %v1671
        %1673 = vmatmul.bf16.gmra.mxu0 %v1417
        %v1674 = vpop.f32.mrf.mxu0
        %v1675 = vadd.f32 %v1177, %v1674
        %v1676 = vpop.f32.mrf.mxu0
        %v1677 = vadd.f32 %v1179, %v1676
        %1678 = vmatmul.bf16.gmra.mxu0 %v1419
        %v1679 = vpop.f32.mrf.mxu0
        %v1680 = vadd.f32 %v1182, %v1679
        %v1681 = vpop.f32.mrf.mxu0
        %v1682 = vadd.f32 %v1184, %v1681
        %1683 = vmatmul.bf16.gmra.mxu0 %v1421
        %v1684 = vpop.f32.mrf.mxu0
        %v1685 = vadd.f32 %v1187, %v1684
        %v1686 = vpop.f32.mrf.mxu0
        %v1687 = vadd.f32 %v1189, %v1686
        %1688 = vmatmul.bf16.gmra.mxu0 %v1423
        %v1689 = vpop.f32.mrf.mxu0
        %v1690 = vadd.f32 %v1192, %v1689
        %v1691 = vpop.f32.mrf.mxu0
        %v1692 = vadd.f32 %v1194, %v1691
        %1693 = vmatmul.bf16.gmra.mxu0 %v1425
        %v1694 = vpop.f32.mrf.mxu0
        %v1695 = vadd.f32 %v1197, %v1694
        %v1696 = vpop.f32.mrf.mxu0
        %v1697 = vadd.f32 %v1199, %v1696
        %1698 = vmatmul.bf16.gmra.mxu0 %v1427
        %v1699 = vpop.f32.mrf.mxu0
        %v1700 = vadd.f32 %v1202, %v1699
        %v1701 = vpop.f32.mrf.mxu0
        %v1702 = vadd.f32 %v1204, %v1701
        %1703 = vmatmul.bf16.gmra.mxu0 %v1429
        %v1704 = vpop.f32.mrf.mxu0
        %v1705 = vadd.f32 %v1207, %v1704
        %v1706 = vpop.f32.mrf.mxu0
        %v1707 = vadd.f32 %v1209, %v1706
        %1708 = vmatmul.bf16.gmra.mxu0 %v1431
        %v1709 = vpop.f32.mrf.mxu0
        %v1710 = vadd.f32 %v1212, %v1709
        %v1711 = vpop.f32.mrf.mxu0
        %v1712 = vadd.f32 %v1214, %v1711
        %1713 = vdwg.mxu0
        %1714 = vmatpush.bf16.msra.mxu0 %v1591
        %1715 = vmatpush.bf16.msra.mxu0 %v1589
        %1716 = vmatpush.bf16.msra.mxu0 %v1587
        %1717 = vmatpush.bf16.msra.mxu0 %v1585
        %1718 = vmatpush.bf16.msra.mxu0 %v1583
        %1719 = vmatpush.bf16.msra.mxu0 %v1581
        %1720 = vmatpush.bf16.msra.mxu0 %v1579
        %1721 = vmatpush.bf16.msra.mxu0 %v1577
        %1722 = vmatmul.bf16.gmra.mxu0 %v1402
        %v1723 = vpop.f32.mrf.mxu0
        %v1724 = vadd.f32 %v1635, %v1723
        %v1725 = vpop.f32.mrf.mxu0
        %v1726 = vadd.f32 %v1637, %v1725
        %1727 = vmatmul.bf16.gmra.mxu0 %v1404
        %v1728 = vpop.f32.mrf.mxu0
        %v1729 = vadd.f32 %v1640, %v1728
        %v1730 = vpop.f32.mrf.mxu0
        %v1731 = vadd.f32 %v1642, %v1730
        %1732 = vmatmul.bf16.gmra.mxu0 %v1406
        %v1733 = vpop.f32.mrf.mxu0
        %v1734 = vadd.f32 %v1645, %v1733
        %v1735 = vpop.f32.mrf.mxu0
        %v1736 = vadd.f32 %v1647, %v1735
        %1737 = vmatmul.bf16.gmra.mxu0 %v1408
        %v1738 = vpop.f32.mrf.mxu0
        %v1739 = vadd.f32 %v1650, %v1738
        %v1740 = vpop.f32.mrf.mxu0
        %v1741 = vadd.f32 %v1652, %v1740
        %1742 = vmatmul.bf16.gmra.mxu0 %v1410
        %v1743 = vpop.f32.mrf.mxu0
        %v1744 = vadd.f32 %v1655, %v1743
        %v1745 = vpop.f32.mrf.mxu0
        %v1746 = vadd.f32 %v1657, %v1745
        %1747 = vmatmul.bf16.gmra.mxu0 %v1412
        %v1748 = vpop.f32.mrf.mxu0
        %v1749 = vadd.f32 %v1660, %v1748
        %v1750 = vpop.f32.mrf.mxu0
        %v1751 = vadd.f32 %v1662, %v1750
        %1752 = vmatmul.bf16.gmra.mxu0 %v1414
        %v1753 = vpop.f32.mrf.mxu0
        %v1754 = vadd.f32 %v1665, %v1753
        %v1755 = vpop.f32.mrf.mxu0
        %v1756 = vadd.f32 %v1667, %v1755
        %1757 = vmatmul.bf16.gmra.mxu0 %v1416
        %v1758 = vpop.f32.mrf.mxu0
        %v1759 = vadd.f32 %v1670, %v1758
        %v1760 = vpop.f32.mrf.mxu0
        %v1761 = vadd.f32 %v1672, %v1760
        %1762 = vmatmul.bf16.gmra.mxu0 %v1418
        %v1763 = vpop.f32.mrf.mxu0
        %v1764 = vadd.f32 %v1675, %v1763
        %v1765 = vpop.f32.mrf.mxu0
        %v1766 = vadd.f32 %v1677, %v1765
        %1767 = vmatmul.bf16.gmra.mxu0 %v1420
        %v1768 = vpop.f32.mrf.mxu0
        %v1769 = vadd.f32 %v1680, %v1768
        %v1770 = vpop.f32.mrf.mxu0
        %v1771 = vadd.f32 %v1682, %v1770
        %1772 = vmatmul.bf16.gmra.mxu0 %v1422
        %v1773 = vpop.f32.mrf.mxu0
        %v1774 = vadd.f32 %v1685, %v1773
        %v1775 = vpop.f32.mrf.mxu0
        %v1776 = vadd.f32 %v1687, %v1775
        %1777 = vmatmul.bf16.gmra.mxu0 %v1424
        %v1778 = vpop.f32.mrf.mxu0
        %v1779 = vadd.f32 %v1690, %v1778
        %v1780 = vpop.f32.mrf.mxu0
        %v1781 = vadd.f32 %v1692, %v1780
        %1782 = vmatmul.bf16.gmra.mxu0 %v1426
        %v1783 = vpop.f32.mrf.mxu0
        %v1784 = vadd.f32 %v1695, %v1783
        %v1785 = vpop.f32.mrf.mxu0
        %v1786 = vadd.f32 %v1697, %v1785
        %1787 = vmatmul.bf16.gmra.mxu0 %v1428
        %v1788 = vpop.f32.mrf.mxu0
        %v1789 = vadd.f32 %v1700, %v1788
        %v1790 = vpop.f32.mrf.mxu0
        %v1791 = vadd.f32 %v1702, %v1790
        %1792 = vmatmul.bf16.gmra.mxu0 %v1430
        %v1793 = vpop.f32.mrf.mxu0
        %v1794 = vadd.f32 %v1705, %v1793
        %v1795 = vpop.f32.mrf.mxu0
        %v1796 = vadd.f32 %v1707, %v1795
        %1797 = vmatmul.bf16.gmra.mxu0 %v1432
        %v1798 = vpop.f32.mrf.mxu0
        %v1799 = vadd.f32 %v1710, %v1798
        %v1800 = vpop.f32.mrf.mxu0
        %v1801 = vadd.f32 %v1712, %v1800
        %1802 = vdwg.mxu0
        %1803 = vmatpush.bf16.msra.mxu0 %v1576
        %1804 = vmatpush.bf16.msra.mxu0 %v1574
        %1805 = vmatpush.bf16.msra.mxu0 %v1572
        %1806 = vmatpush.bf16.msra.mxu0 %v1570
        %1807 = vmatpush.bf16.msra.mxu0 %v1568
        %1808 = vmatpush.bf16.msra.mxu0 %v1566
        %1809 = vmatpush.bf16.msra.mxu0 %v1564
        %1810 = vmatpush.bf16.msra.mxu0 %v1562
        %1811 = vmatmul.bf16.gmra.mxu0 %v1401
        %v1812 = vpop.f32.mrf.mxu0
        %v1813 = vadd.f32 %v1226, %v1812
        %v1814 = vpop.f32.mrf.mxu0
        %v1815 = vadd.f32 %v1228, %v1814
        %1816 = vmatmul.bf16.gmra.mxu0 %v1403
        %v1817 = vpop.f32.mrf.mxu0
        %v1818 = vadd.f32 %v1231, %v1817
        %v1819 = vpop.f32.mrf.mxu0
        %v1820 = vadd.f32 %v1233, %v1819
        %1821 = vmatmul.bf16.gmra.mxu0 %v1405
        %v1822 = vpop.f32.mrf.mxu0
        %v1823 = vadd.f32 %v1236, %v1822
        %v1824 = vpop.f32.mrf.mxu0
        %v1825 = vadd.f32 %v1238, %v1824
        %1826 = vmatmul.bf16.gmra.mxu0 %v1407
        %v1827 = vpop.f32.mrf.mxu0
        %v1828 = vadd.f32 %v1241, %v1827
        %v1829 = vpop.f32.mrf.mxu0
        %v1830 = vadd.f32 %v1243, %v1829
        %1831 = vmatmul.bf16.gmra.mxu0 %v1409
        %v1832 = vpop.f32.mrf.mxu0
        %v1833 = vadd.f32 %v1246, %v1832
        %v1834 = vpop.f32.mrf.mxu0
        %v1835 = vadd.f32 %v1248, %v1834
        %1836 = vmatmul.bf16.gmra.mxu0 %v1411
        %v1837 = vpop.f32.mrf.mxu0
        %v1838 = vadd.f32 %v1251, %v1837
        %v1839 = vpop.f32.mrf.mxu0
        %v1840 = vadd.f32 %v1253, %v1839
        %1841 = vmatmul.bf16.gmra.mxu0 %v1413
        %v1842 = vpop.f32.mrf.mxu0
        %v1843 = vadd.f32 %v1256, %v1842
        %v1844 = vpop.f32.mrf.mxu0
        %v1845 = vadd.f32 %v1258, %v1844
        %1846 = vmatmul.bf16.gmra.mxu0 %v1415
        %v1847 = vpop.f32.mrf.mxu0
        %v1848 = vadd.f32 %v1261, %v1847
        %v1849 = vpop.f32.mrf.mxu0
        %v1850 = vadd.f32 %v1263, %v1849
        %1851 = vmatmul.bf16.gmra.mxu0 %v1417
        %v1852 = vpop.f32.mrf.mxu0
        %v1853 = vadd.f32 %v1266, %v1852
        %v1854 = vpop.f32.mrf.mxu0
        %v1855 = vadd.f32 %v1268, %v1854
        %1856 = vmatmul.bf16.gmra.mxu0 %v1419
        %v1857 = vpop.f32.mrf.mxu0
        %v1858 = vadd.f32 %v1271, %v1857
        %v1859 = vpop.f32.mrf.mxu0
        %v1860 = vadd.f32 %v1273, %v1859
        %1861 = vmatmul.bf16.gmra.mxu0 %v1421
        %v1862 = vpop.f32.mrf.mxu0
        %v1863 = vadd.f32 %v1276, %v1862
        %v1864 = vpop.f32.mrf.mxu0
        %v1865 = vadd.f32 %v1278, %v1864
        %1866 = vmatmul.bf16.gmra.mxu0 %v1423
        %v1867 = vpop.f32.mrf.mxu0
        %v1868 = vadd.f32 %v1281, %v1867
        %v1869 = vpop.f32.mrf.mxu0
        %v1870 = vadd.f32 %v1283, %v1869
        %1871 = vmatmul.bf16.gmra.mxu0 %v1425
        %v1872 = vpop.f32.mrf.mxu0
        %v1873 = vadd.f32 %v1286, %v1872
        %v1874 = vpop.f32.mrf.mxu0
        %v1875 = vadd.f32 %v1288, %v1874
        %1876 = vmatmul.bf16.gmra.mxu0 %v1427
        %v1877 = vpop.f32.mrf.mxu0
        %v1878 = vadd.f32 %v1291, %v1877
        %v1879 = vpop.f32.mrf.mxu0
        %v1880 = vadd.f32 %v1293, %v1879
        %1881 = vmatmul.bf16.gmra.mxu0 %v1429
        %v1882 = vpop.f32.mrf.mxu0
        %v1883 = vadd.f32 %v1296, %v1882
        %v1884 = vpop.f32.mrf.mxu0
        %v1885 = vadd.f32 %v1298, %v1884
        %1886 = vmatmul.bf16.gmra.mxu0 %v1431
        %v1887 = vpop.f32.mrf.mxu0
        %v1888 = vadd.f32 %v1301, %v1887
        %v1889 = vpop.f32.mrf.mxu0
        %v1890 = vadd.f32 %v1303, %v1889
        %1891 = vdwg.mxu0
        %1892 = vmatpush.bf16.msra.mxu0 %v1592
        %1893 = vmatpush.bf16.msra.mxu0 %v1590
        %1894 = vmatpush.bf16.msra.mxu0 %v1588
        %1895 = vmatpush.bf16.msra.mxu0 %v1586
        %1896 = vmatpush.bf16.msra.mxu0 %v1584
        %1897 = vmatpush.bf16.msra.mxu0 %v1582
        %1898 = vmatpush.bf16.msra.mxu0 %v1580
        %1899 = vmatpush.bf16.msra.mxu0 %v1578
        %1900 = vmatmul.bf16.gmra.mxu0 %v1402
        %v1901 = vpop.f32.mrf.mxu0
        %v1902 = vadd.f32 %v1813, %v1901
        %v1903 = vpop.f32.mrf.mxu0
        %v1904 = vadd.f32 %v1815, %v1903
        %1905 = vmatmul.bf16.gmra.mxu0 %v1404
        %v1906 = vpop.f32.mrf.mxu0
        %v1907 = vadd.f32 %v1818, %v1906
        %v1908 = vpop.f32.mrf.mxu0
        %v1909 = vadd.f32 %v1820, %v1908
        %1910 = vmatmul.bf16.gmra.mxu0 %v1406
        %v1911 = vpop.f32.mrf.mxu0
        %v1912 = vadd.f32 %v1823, %v1911
        %v1913 = vpop.f32.mrf.mxu0
        %v1914 = vadd.f32 %v1825, %v1913
        %1915 = vmatmul.bf16.gmra.mxu0 %v1408
        %v1916 = vpop.f32.mrf.mxu0
        %v1917 = vadd.f32 %v1828, %v1916
        %v1918 = vpop.f32.mrf.mxu0
        %v1919 = vadd.f32 %v1830, %v1918
        %1920 = vmatmul.bf16.gmra.mxu0 %v1410
        %v1921 = vpop.f32.mrf.mxu0
        %v1922 = vadd.f32 %v1833, %v1921
        %v1923 = vpop.f32.mrf.mxu0
        %v1924 = vadd.f32 %v1835, %v1923
        %1925 = vmatmul.bf16.gmra.mxu0 %v1412
        %v1926 = vpop.f32.mrf.mxu0
        %v1927 = vadd.f32 %v1838, %v1926
        %v1928 = vpop.f32.mrf.mxu0
        %v1929 = vadd.f32 %v1840, %v1928
        %1930 = vmatmul.bf16.gmra.mxu0 %v1414
        %v1931 = vpop.f32.mrf.mxu0
        %v1932 = vadd.f32 %v1843, %v1931
        %v1933 = vpop.f32.mrf.mxu0
        %v1934 = vadd.f32 %v1845, %v1933
        %1935 = vmatmul.bf16.gmra.mxu0 %v1416
        %v1936 = vpop.f32.mrf.mxu0
        %v1937 = vadd.f32 %v1848, %v1936
        %v1938 = vpop.f32.mrf.mxu0
        %v1939 = vadd.f32 %v1850, %v1938
        %1940 = vmatmul.bf16.gmra.mxu0 %v1418
        %v1941 = vpop.f32.mrf.mxu0
        %v1942 = vadd.f32 %v1853, %v1941
        %v1943 = vpop.f32.mrf.mxu0
        %v1944 = vadd.f32 %v1855, %v1943
        %1945 = vmatmul.bf16.gmra.mxu0 %v1420
        %v1946 = vpop.f32.mrf.mxu0
        %v1947 = vadd.f32 %v1858, %v1946
        %v1948 = vpop.f32.mrf.mxu0
        %v1949 = vadd.f32 %v1860, %v1948
        %1950 = vmatmul.bf16.gmra.mxu0 %v1422
        %v1951 = vpop.f32.mrf.mxu0
        %v1952 = vadd.f32 %v1863, %v1951
        %v1953 = vpop.f32.mrf.mxu0
        %v1954 = vadd.f32 %v1865, %v1953
        %1955 = vmatmul.bf16.gmra.mxu0 %v1424
        %v1956 = vpop.f32.mrf.mxu0
        %v1957 = vadd.f32 %v1868, %v1956
        %v1958 = vpop.f32.mrf.mxu0
        %v1959 = vadd.f32 %v1870, %v1958
        %1960 = vmatmul.bf16.gmra.mxu0 %v1426
        %v1961 = vpop.f32.mrf.mxu0
        %v1962 = vadd.f32 %v1873, %v1961
        %v1963 = vpop.f32.mrf.mxu0
        %v1964 = vadd.f32 %v1875, %v1963
        %1965 = vmatmul.bf16.gmra.mxu0 %v1428
        %v1966 = vpop.f32.mrf.mxu0
        %v1967 = vadd.f32 %v1878, %v1966
        %v1968 = vpop.f32.mrf.mxu0
        %v1969 = vadd.f32 %v1880, %v1968
        %1970 = vmatmul.bf16.gmra.mxu0 %v1430
        %v1971 = vpop.f32.mrf.mxu0
        %v1972 = vadd.f32 %v1883, %v1971
        %v1973 = vpop.f32.mrf.mxu0
        %v1974 = vadd.f32 %v1885, %v1973
        %1975 = vmatmul.bf16.gmra.mxu0 %v1432
        %v1976 = vpop.f32.mrf.mxu0
        %v1977 = vadd.f32 %v1888, %v1976
        %v1978 = vpop.f32.mrf.mxu0
        %v1979 = vadd.f32 %v1890, %v1978
        %1980 = vdwg.mxu0
        %1981 = vst [vmem:[%s363] sm:$0xff] %v1724
        %1982 = vst [vmem:[%s363 + $0x8] sm:$0xff] %v1902
        %1983 = vst [vmem:[%s363 + $0x10] sm:$0xff] %v1726
        %1984 = vst [vmem:[%s363 + $0x18] sm:$0xff] %v1904
        %1985 = vst [vmem:[%s363 + $0x20] sm:$0xff] %v1729
        %1986 = vst [vmem:[%s363 + $0x28] sm:$0xff] %v1907
        %1987 = vst [vmem:[%s363 + $0x30] sm:$0xff] %v1731
        %1988 = vst [vmem:[%s363 + $0x38] sm:$0xff] %v1909
        %1989 = vst [vmem:[%s363 + $0x40] sm:$0xff] %v1734
        %1990 = vst [vmem:[%s363 + $0x48] sm:$0xff] %v1912
        %1991 = vst [vmem:[%s363 + $0x50] sm:$0xff] %v1736
        %1992 = vst [vmem:[%s363 + $0x58] sm:$0xff] %v1914
        %1993 = vst [vmem:[%s363 + $0x60] sm:$0xff] %v1739
        %1994 = vst [vmem:[%s363 + $0x68] sm:$0xff] %v1917
        %1995 = vst [vmem:[%s363 + $0x70] sm:$0xff] %v1741
        %1996 = vst [vmem:[%s363 + $0x78] sm:$0xff] %v1919
        %1997 = vst [vmem:[%s363 + $0x80] sm:$0xff] %v1744
        %1998 = vst [vmem:[%s363 + $0x88] sm:$0xff] %v1922
        %1999 = vst [vmem:[%s363 + $0x90] sm:$0xff] %v1746
        %2000 = vst [vmem:[%s363 + $0x98] sm:$0xff] %v1924
        %2001 = vst [vmem:[%s363 + $0xa0] sm:$0xff] %v1749
        %2002 = vst [vmem:[%s363 + $0xa8] sm:$0xff] %v1927
        %2003 = vst [vmem:[%s363 + $0xb0] sm:$0xff] %v1751
        %2004 = vst [vmem:[%s363 + $0xb8] sm:$0xff] %v1929
        %2005 = vst [vmem:[%s363 + $0xc0] sm:$0xff] %v1754
        %2006 = vst [vmem:[%s363 + $0xc8] sm:$0xff] %v1932
        %2007 = vst [vmem:[%s363 + $0xd0] sm:$0xff] %v1756
        %2008 = vst [vmem:[%s363 + $0xd8] sm:$0xff] %v1934
        %2009 = vst [vmem:[%s363 + $0xe0] sm:$0xff] %v1759
        %2010 = vst [vmem:[%s363 + $0xe8] sm:$0xff] %v1937
        %2011 = vst [vmem:[%s363 + $0xf0] sm:$0xff] %v1761
        %2012 = vst [vmem:[%s363 + $0xf8] sm:$0xff] %v1939
        %2013 = vst [vmem:[%s363 + $0x100] sm:$0xff] %v1764
        %2014 = vst [vmem:[%s363 + $0x108] sm:$0xff] %v1942
        %2015 = vst [vmem:[%s363 + $0x110] sm:$0xff] %v1766
        %2016 = vst [vmem:[%s363 + $0x118] sm:$0xff] %v1944
        %2017 = vst [vmem:[%s363 + $0x120] sm:$0xff] %v1769
        %2018 = vst [vmem:[%s363 + $0x128] sm:$0xff] %v1947
        %2019 = vst [vmem:[%s363 + $0x130] sm:$0xff] %v1771
        %2020 = vst [vmem:[%s363 + $0x138] sm:$0xff] %v1949
        %2021 = vst [vmem:[%s363 + $0x140] sm:$0xff] %v1774
        %2022 = vst [vmem:[%s363 + $0x148] sm:$0xff] %v1952
        %2023 = vst [vmem:[%s363 + $0x150] sm:$0xff] %v1776
        %2024 = vst [vmem:[%s363 + $0x158] sm:$0xff] %v1954
        %2025 = vst [vmem:[%s363 + $0x160] sm:$0xff] %v1779
        %2026 = vst [vmem:[%s363 + $0x168] sm:$0xff] %v1957
        %2027 = vst [vmem:[%s363 + $0x170] sm:$0xff] %v1781
        %2028 = vst [vmem:[%s363 + $0x178] sm:$0xff] %v1959
        %2029 = vst [vmem:[%s363 + $0x180] sm:$0xff] %v1784
        %2030 = vst [vmem:[%s363 + $0x188] sm:$0xff] %v1962
        %2031 = vst [vmem:[%s363 + $0x190] sm:$0xff] %v1786
        %2032 = vst [vmem:[%s363 + $0x198] sm:$0xff] %v1964
        %2033 = vst [vmem:[%s363 + $0x1a0] sm:$0xff] %v1789
        %2034 = vst [vmem:[%s363 + $0x1a8] sm:$0xff] %v1967
        %2035 = vst [vmem:[%s363 + $0x1b0] sm:$0xff] %v1791
        %2036 = vst [vmem:[%s363 + $0x1b8] sm:$0xff] %v1969
        %2037 = vst [vmem:[%s363 + $0x1c0] sm:$0xff] %v1794
        %2038 = vst [vmem:[%s363 + $0x1c8] sm:$0xff] %v1972
        %2039 = vst [vmem:[%s363 + $0x1d0] sm:$0xff] %v1796
        %2040 = vst [vmem:[%s363 + $0x1d8] sm:$0xff] %v1974
        %2041 = vst [vmem:[%s363 + $0x1e0] sm:$0xff] %v1799
        %2042 = vst [vmem:[%s363 + $0x1e8] sm:$0xff] %v1977
        %2043 = vst [vmem:[%s363 + $0x1f0] sm:$0xff] %v1801
        %2044 = vst [vmem:[%s363 + $0x1f8] sm:$0xff] %v1979
        %s2045 = sand.u32 %s205, 1
        %s2046 = scalar_lea.sflag [#allocation5], %s2045
        %s2047 = sand.u32 %s205, 1
        %s2048 = smul.addr %s2047, 512
        %s2049 = scalar_lea.vmem [#allocation8], %s2048
        // Predicated region
        $region57: #{tpu_custom_call.1} parent=43 // pred_check
          %p2050 = pneg %p215
        $region58: #{tpu_custom_call.1} parent=43 // pred_check_branch
          %2052 = sbr.rel (%p2050) target = $region60
        $region59: #{tpu_custom_call.1} parent=43 // pred_region
          %s2053 = smul.u32 32, %s32
          %s2054 = smul.u32 2, %s33
          %2056 = vsyncadd %s2046, 0
          %s2057 = smul.addr %s2053, 4
          %s2058 = sadd.s32 %s2054, %s2057
          %s2059 = smul.addr %s31, 128
          %s2060 = sadd.s32 %s2058, %s2059
          %s2061 = smul.addr %s2060, 8
          %s2062 = scalar_lea.hbm %s6, %s2061
          %s2063 = sshll.u32 %s2049, 4
          %s2064 = int_to_ptr.vmem [resolvable:$true] %s2063
          %s2065 = sshll.u32 %s2062, 4
          %s2066 = int_to_ptr.hbm [resolvable:$true] %s2065
          %2071 = dma.vmem_to_hbm [thread:$0]  %s2064, 8192, %s2066, %s2046, 256, 512, 16
        $region60: #{tpu_custom_call.1} parent=43 // pred_fallthru
          _
      $region44: #{tpu_custom_call.1} parent=5 // pred_fallthru
        _
      %p2072 = scmp.le.s32.totalorder 2, %s21
      // Predicated region
      $region61: #{tpu_custom_call.1} parent=5 // pred_check
        %p2073 = pneg %p2072
      $region62: #{tpu_custom_call.1} parent=5 // pred_check_branch
        %2075 = sbr.rel (%p2073) target = $region64
      $region63: #{tpu_custom_call.1} parent=5 // pred_region
        %s2076 = ssub.s32 %s21, 2
        // Predicated region
        $region65: #{tpu_custom_call.1} parent=63 // pred_check
          %p2077 = pneg %p221
        $region66: #{tpu_custom_call.1} parent=63 // pred_check_branch
          %2079 = sbr.rel (%p2077) target = $region68
        $region67: #{tpu_custom_call.1} parent=63 // pred_region
          %s2080 = sand.u32 %s206, 1
          %s2081 = scalar_lea.sflag [#allocation5], %s2080
          %s2082 = sand.u32 %s206, 1
          %s2083 = smul.addr %s2082, 512
          %s2084 = scalar_lea.vmem [#allocation8], %s2083
          %2086 = dma.done %s2081, 8192
        $region68: #{tpu_custom_call.1} parent=63 // pred_fallthru
          _
      $region64: #{tpu_custom_call.1} parent=5 // pred_fallthru
        _
    $region6: #{tpu_custom_call.1} parent=1 // loop_footer
      %s25 = sadd.s32 1, %s21
    $region7: #{tpu_custom_call.1} parent=1 // loop_footer_branch
      %20 = sbr.rel target = $region3
    $region8: #{tpu_custom_call.1} parent=1 // loop_exit
      _
    %2087 = vsyncpa [#allocation4], 1
    %s2088 = scalar_lea.sflag [#allocation4], 1
    %2089 = vsyncpa %s2088, 1
    %2090 = vsyncpa [#allocation7], 1
    %s2091 = scalar_lea.sflag [#allocation7], 1
    %2092 = vsyncpa %s2091, 1
    %2093 = vsyncpa [#allocation5], 1
    %s2094 = scalar_lea.sflag [#allocation5], 1
    %2095 = vsyncpa %s2094, 1

</llo_original>
